<compile_context>
chip_gen: v6e
topology: v6e:2x2x1
jax: 0.10.0
libtpu: 0.0.40
codegen_flags: <defaults>
</compile_context>

<pallas_src>
import jax
import jax.numpy as jnp
import numpy as np
from jax.experimental import pallas as pl
from jax.experimental.pallas import tpu as pltpu

_EPS = 1e-5


def _bn_fold(gamma, beta, mean, var):
    """Fold eval-mode BatchNorm into per-channel (scale, bias), f32, shape (1,C)."""
    scale = gamma / jnp.sqrt(var + _EPS)
    bias = beta - mean * scale
    return scale.reshape(1, -1).astype(jnp.float32), bias.reshape(1, -1).astype(jnp.float32)


def basic_block_forward(x_nchw, params, stride):
    """BasicBlock.forward.  x_nchw: (N, Cin, H, W) -> (N, Cout, Ho, Wo)."""
    assert stride in (1, 2), "ResNet BasicBlock uses stride 1 or 2"
    bf16 = jnp.bfloat16

    x = jnp.transpose(x_nchw, (0, 2, 3, 1)).astype(bf16)          # NHWC, bf16
    N, H, W, Cin = x.shape
    Cout = params["w1"].shape[-1]
    Ho = (H - 1) // stride + 1
    Wo = (W - 1) // stride + 1
    has_proj = (stride != 1) or (Cin != Cout)

    # ---- parameter prep (BN folded, weights reshaped to deep-K form, bf16) ----
    s1, b1 = _bn_fold(*params["bn1"])
    s2, b2 = _bn_fold(*params["bn2"])
    w1r = params["w1"].reshape(3, 3 * Cin, Cout).astype(bf16)      # [kh, kw*Cin+cin, cout]
    w2r = params["w2"].reshape(3, 3 * Cout, Cout).astype(bf16)

    # ---- input prep ----
    if stride == 1:
        x_in = x                                                   # pad done in-kernel
        x_spec = pl.BlockSpec((None, H, W, Cin), lambda n: (n, 0, 0, 0))
    else:
        # Phase-split (space-to-depth) padded layout: x6[n, a, p, b, q*Cin+c]
        # == xpad[n, 2a+p, 2b+q, c].  The reshape is free (contiguous); the pad
        # is the only wrapper-side pass over x.
        Hp, Wp = 2 * (Ho + 1), 2 * (Wo + 1)
        xpad = jnp.pad(x, ((0, 0), (1, Hp - H - 1), (1, Wp - W - 1), (0, 0)))
        x_in = xpad.reshape(N, Hp // 2, 2, Wp // 2, 2 * Cin)
        x_spec = pl.BlockSpec((None, Hp // 2, 2, Wp // 2, 2 * Cin),
                              lambda n: (n, 0, 0, 0, 0))

    inputs = [x_in, w1r, s1, b1, w2r, s2, b2]
    in_specs = [
        x_spec,
        pl.BlockSpec((3, 3 * Cin, Cout), lambda n: (0, 0, 0)),
        pl.BlockSpec((1, Cout), lambda n: (0, 0)),
        pl.BlockSpec((1, Cout), lambda n: (0, 0)),
        pl.BlockSpec((3, 3 * Cout, Cout), lambda n: (0, 0, 0)),
        pl.BlockSpec((1, Cout), lambda n: (0, 0)),
        pl.BlockSpec((1, Cout), lambda n: (0, 0)),
    ]
    if has_proj:
        ss, bs = _bn_fold(*params["bns"])
        inputs += [params["ws"].astype(bf16), ss, bs]
        in_specs += [
            pl.BlockSpec((Cin, Cout), lambda n: (0, 0)),
            pl.BlockSpec((1, Cout), lambda n: (0, 0)),
            pl.BlockSpec((1, Cout), lambda n: (0, 0)),
        ]

    scratch_shapes = []
    if stride == 1:
        scratch_shapes.append(pltpu.VMEM((H + 2, W + 2, Cin), bf16))   # padded x
    scratch_shapes.append(pltpu.VMEM((Ho + 2, Wo + 2, Cout), bf16))    # padded y (conv1 out)
    scratch_shapes.append(pltpu.VMEM((Ho * Wo, Cout), jnp.float32))    # f32 accumulator

    # ------------------------------ fused kernel ------------------------------ #
    def kernel(*refs):
        if has_proj:
            (x_ref, w1_ref, s1_ref, b1_ref, w2_ref, s2_ref, b2_ref,
             ws_ref, ss_ref, bs_ref, o_ref, *scr) = refs
        else:
            (x_ref, w1_ref, s1_ref, b1_ref, w2_ref, s2_ref, b2_ref,
             o_ref, *scr) = refs
        if stride == 1:
            xp_ref, yp_ref, acc_ref = scr
        else:
            yp_ref, acc_ref = scr

        def accum(kh, patch, w_ref, kdim):
            d = jnp.dot(patch.reshape(Ho * Wo, kdim), w_ref[kh],
                        preferred_element_type=jnp.float32)
            if kh == 0:
                acc_ref[...] = d
            else:
                acc_ref[...] += d

        # ---------------- conv1 (stride folded in) + BN1 + ReLU ----------------
        if stride == 1:
            xv = x_ref[...]                                        # (H, W, Cin)
            zc = jnp.zeros((H, 1, Cin), bf16)
            zr = jnp.zeros((W + 2, Cin), bf16)
            xp_ref[0] = zr
            xp_ref[H + 1] = zr
            xp_ref[1:H + 1] = jnp.concatenate([zc, xv, zc], axis=1)
            for kh in range(3):
                rows = xp_ref[kh:kh + Ho]                          # (Ho, W+2, Cin)
                patch = jnp.concatenate(
                    [rows[:, kw:kw + Wo, :] for kw in range(3)], axis=-1)
                accum(kh, patch, w1_ref, 3 * Cin)
        else:
            for kh in range(3):
                rs, ph = kh // 2, kh % 2
                # phase layout: channels [0:Cin] = even cols, [Cin:2Cin] = odd cols
                a = x_ref[rs:rs + Ho, ph, 0:Wo, :]                 # taps kw=0,1
                b = x_ref[rs:rs + Ho, ph, 1:Wo + 1, 0:Cin]         # tap  kw=2
                patch = jnp.concatenate([a, b], axis=-1)           # (Ho, Wo, 3Cin)
                accum(kh, patch, w1_ref, 3 * Cin)

        y = jnp.maximum(acc_ref[...] * s1_ref[...] + b1_ref[...], 0.0)

        # stash conv1 output (bf16) in a zero-padded VMEM scratch for conv2
        zc2 = jnp.zeros((Ho, 1, Cout), bf16)
        zr2 = jnp.zeros((Wo + 2, Cout), bf16)
        yp_ref[0] = zr2
        yp_ref[Ho + 1] = zr2
        yp_ref[1:Ho + 1] = jnp.concatenate(
            [zc2, y.reshape(Ho, Wo, Cout).astype(bf16), zc2], axis=1)

        # ---------------------------- conv2 + BN2 -----------------------------
        for kh in range(3):
            rows = yp_ref[kh:kh + Ho]                              # (Ho, Wo+2, Cout)
            patch = jnp.concatenate(
                [rows[:, kw:kw + Wo, :] for kw in range(3)], axis=-1)
            accum(kh, patch, w2_ref, 3 * Cout)
        res = acc_ref[...] * s2_ref[...] + b2_ref[...]

        # --------------------- shortcut + add + final ReLU ---------------------
        if has_proj:
            if stride == 1:
                xs = x_ref[...].reshape(Ho * Wo, Cin)
            else:
                # unpadded x[2ho, 2wo] == xpad[2ho+1, 2wo+1] -> row phase 1, col phase 1
                xs = x_ref[0:Ho, 1, 0:Wo, Cin:2 * Cin].reshape(Ho * Wo, Cin)
            sc = jnp.dot(xs, ws_ref[...], preferred_element_type=jnp.float32)
            sc = sc * ss_ref[...] + bs_ref[...]
        else:
            sc = x_ref[...].reshape(Ho * Wo, Cout).astype(jnp.float32)

        o_ref[...] = jnp.maximum(res + sc, 0.0).astype(o_ref.dtype)

    out = pl.pallas_call(
        kernel,
        out_shape=jax.ShapeDtypeStruct((N, Ho * Wo, Cout), jnp.float32),
        grid=(N,),
        in_specs=in_specs,
        out_specs=pl.BlockSpec((None, Ho * Wo, Cout), lambda n: (n, 0, 0)),
        scratch_shapes=scratch_shapes,
        compiler_params=pltpu.CompilerParams(
            dimension_semantics=("parallel",),
            vmem_limit_bytes=32 * 1024 * 1024),
    )(*inputs)

    out = out.reshape(N, Ho, Wo, Cout)
    return jnp.transpose(out, (0, 3, 1, 2))                        # NCHW, f32


# ------------------------------ synthetic params ---------------------------- #

def init_params(key, cin, cout, stride):
    """Deterministic synthetic params.  Conv weights stored HWIO (f32 master)."""
    keys = jax.random.split(key, 6)

    def bn(k, c):
        g = 1.0 + 0.1 * jax.random.normal(jax.random.fold_in(k, 0), (c,), jnp.float32)
        b = 0.1 * jax.random.normal(jax.random.fold_in(k, 1), (c,), jnp.float32)
        m = 0.1 * jax.random.normal(jax.random.fold_in(k, 2), (c,), jnp.float32)
        v = jax.random.uniform(jax.random.fold_in(k, 3), (c,), jnp.float32, 0.5, 1.5)
        return g, b, m, v

    p = {
        "w1": jax.random.normal(keys[0], (3, 3, cin, cout), jnp.float32) / (9 * cin) ** 0.5,
        "bn1": bn(keys[1], cout),
        "w2": jax.random.normal(keys[2], (3, 3, cout, cout), jnp.float32) / (9 * cout) ** 0.5,
        "bn2": bn(keys[3], cout),
    }
    if stride != 1 or cin != cout:
        p["ws"] = jax.random.normal(keys[4], (cin, cout), jnp.float32) / cin ** 0.5
        p["bns"] = bn(keys[5], cout)
    return p


# ------------------------------ pure-JAX reference -------------------------- #

def reference_forward(x_nchw, params, stride):
    """f32 reference with the same bf16 input quantization as the kernel."""
    f32 = jnp.float32
    bf = lambda a: a.astype(jnp.bfloat16).astype(f32)
    x = bf(jnp.transpose(x_nchw, (0, 2, 3, 1)).astype(f32))

    def conv(inp, w, s, pad):
        return jax.lax.conv_general_dilated(
            inp, w, (s, s), ((pad, pad), (pad, pad)),
            dimension_numbers=("NHWC", "HWIO", "NHWC"))

    def bn(y, pr):
        g, b, m, v = pr
        return (y - m) / jnp.sqrt(v + _EPS) * g + b

    y = jax.nn.relu(bn(conv(x, bf(params["w1"]), stride, 1), params["bn1"]))
    y = bf(y)   # kernel stores the intermediate activation in bf16
    y = bn(conv(y, bf(params["w2"]), 1, 1), params["bn2"])
    if "ws" in params:
        w1x1 = bf(params["ws"]).reshape(1, 1, *params["ws"].shape)
        sc = bn(conv(x, w1x1, stride, 0), params["bns"])
    else:
        sc = x
    out = jax.nn.relu(y + sc)
    return jnp.transpose(out, (0, 3, 1, 2))


# ------------------------------------ main ---------------------------------- #

if __name__ == "__main__":
    key = jax.random.PRNGKey(0)
    kx, kp = jax.random.split(key, 2)

    cases = [
        # (x NCHW shape, cin, cout, stride, expected out shape)
        ((2, 4, 16, 16), 4, 8, 2, (2, 8, 8, 8)),     # projection + downsample
        ((2, 8, 16, 16), 8, 8, 1, (2, 8, 16, 16)),   # identity shortcut
        ((2, 4, 16, 16), 4, 8, 1, (2, 8, 16, 16)),   # projection, stride 1
    ]
    for i, (xshape, cin, cout, stride, oshape) in enumerate(cases):
        x = jax.random.normal(jax.random.fold_in(kx, i), xshape, jnp.float32)
        params = init_params(jax.random.fold_in(kp, i), cin=cin, cout=cout, stride=stride)
        out = jax.block_until_ready(basic_block_forward(x, params, stride))
        ref = reference_forward(x, params, stride)
        assert out.shape == oshape, (out.shape, oshape)
        np.testing.assert_allclose(np.asarray(out), np.asarray(ref),
                                   rtol=1e-2, atol=1e-2)

    print("KERNEL_OK")
</pallas_src>

<mosaic_0001>
module attributes {stable_mosaic.version = 11 : i64} {
  func.func @kernel(%arg0: i32, %arg1: memref<1x9x2x9x8xbf16, #tpu.memory_space<vmem>>, %arg2: memref<3x12x8xbf16, #tpu.memory_space<vmem>>, %arg3: memref<1x8xf32, #tpu.memory_space<vmem>>, %arg4: memref<1x8xf32, #tpu.memory_space<vmem>>, %arg5: memref<3x24x8xbf16, #tpu.memory_space<vmem>>, %arg6: memref<1x8xf32, #tpu.memory_space<vmem>>, %arg7: memref<1x8xf32, #tpu.memory_space<vmem>>, %arg8: memref<4x8xbf16, #tpu.memory_space<vmem>>, %arg9: memref<1x8xf32, #tpu.memory_space<vmem>>, %arg10: memref<1x8xf32, #tpu.memory_space<vmem>>, %arg11: memref<1x64x8xf32, #tpu.memory_space<vmem>>, %arg12: memref<10x10x8xbf16, #tpu.memory_space<vmem>>, %arg13: memref<64x8xf32, #tpu.memory_space<vmem>>) attributes {dimension_semantics = [#tpu.dimension_semantics<parallel>], iteration_bounds = array<i64: 2>, scalar_prefetch = 0 : i64, scratch_operands = 2 : i64, tpu.core_type = #tpu.core_type<tc>, window_params = [{transform_indices = @transform_0, window_bounds = array<i64: 1, 9, 2, 9, 8>}, {pipeline_mode = #tpu.pipeline_mode<synchronous>, transform_indices = @transform_1, window_bounds = array<i64: 3, 12, 8>}, {pipeline_mode = #tpu.pipeline_mode<synchronous>, transform_indices = @transform_2, window_bounds = array<i64: 1, 8>}, {pipeline_mode = #tpu.pipeline_mode<synchronous>, transform_indices = @transform_3, window_bounds = array<i64: 1, 8>}, {pipeline_mode = #tpu.pipeline_mode<synchronous>, transform_indices = @transform_4, window_bounds = array<i64: 3, 24, 8>}, {pipeline_mode = #tpu.pipeline_mode<synchronous>, transform_indices = @transform_5, window_bounds = array<i64: 1, 8>}, {pipeline_mode = #tpu.pipeline_mode<synchronous>, transform_indices = @transform_6, window_bounds = array<i64: 1, 8>}, {pipeline_mode = #tpu.pipeline_mode<synchronous>, transform_indices = @transform_7, window_bounds = array<i64: 4, 8>}, {pipeline_mode = #tpu.pipeline_mode<synchronous>, transform_indices = @transform_8, window_bounds = array<i64: 1, 8>}, {pipeline_mode = #tpu.pipeline_mode<synchronous>, transform_indices = @transform_9, window_bounds = array<i64: 1, 8>}, {transform_indices = @transform_10, window_bounds = array<i64: 1, 64, 8>}]} {
    %c0 = arith.constant 0 : index
    %c0_0 = arith.constant 0 : index
    %c0_1 = arith.constant 0 : index
    %c0_2 = arith.constant 0 : index
    %c0_3 = arith.constant 0 : index
    %0 = vector.load %arg1[%c0, %c0_0, %c0_1, %c0_2, %c0_3] : memref<1x9x2x9x8xbf16, #tpu.memory_space<vmem>>, vector<1x8x1x8x8xbf16>
    %1 = vector.shape_cast %0 : vector<1x8x1x8x8xbf16> to vector<8x8x8xbf16>
    %c0_4 = arith.constant 0 : index
    %c0_5 = arith.constant 0 : index
    %c0_6 = arith.constant 0 : index
    %c1 = arith.constant 1 : index
    %c0_7 = arith.constant 0 : index
    %2 = vector.load %arg1[%c0_4, %c0_5, %c0_6, %c1, %c0_7] : memref<1x9x2x9x8xbf16, #tpu.memory_space<vmem>>, vector<1x8x1x8x4xbf16>
    %3 = vector.shape_cast %2 : vector<1x8x1x8x4xbf16> to vector<8x8x4xbf16>
    %4 = tpu.concatenate %1, %3 in 2 : vector<8x8x8xbf16>, vector<8x8x4xbf16> -> vector<8x8x12xbf16>
    %5 = vector.shape_cast %4 : vector<8x8x12xbf16> to vector<64x12xbf16>
    %c0_8 = arith.constant 0 : index
    %c0_9 = arith.constant 0 : index
    %c0_10 = arith.constant 0 : index
    %6 = vector.load %arg2[%c0_8, %c0_9, %c0_10] : memref<3x12x8xbf16, #tpu.memory_space<vmem>>, vector<1x12x8xbf16>
    %7 = vector.shape_cast %6 : vector<1x12x8xbf16> to vector<12x8xbf16>
    %cst = arith.constant dense<0.000000e+00> : vector<64x8xf32>
    %8 = tpu.matmul %5, %7, %cst {dimension_numbers = #tpu.dot_dimension_numbers<[1], [0], [0], [1], [0, 0, 1, 1], [], []>} : vector<64x12xbf16>, vector<12x8xbf16>, vector<64x8xf32> -> vector<64x8xf32>
    %c0_11 = arith.constant 0 : index
    %c0_12 = arith.constant 0 : index
    %9 = vector.load %arg13[%c0_11, %c0_12] : memref<64x8xf32, #tpu.memory_space<vmem>>, vector<64x8xf32>
    tpu.vector_store %arg13[%c0_11, %c0_12], %8 {strides = array<i32>} : memref<64x8xf32, #tpu.memory_space<vmem>>, vector<64x8xf32>,
    %c0_13 = arith.constant 0 : index
    %c0_14 = arith.constant 0 : index
    %c1_15 = arith.constant 1 : index
    %c0_16 = arith.constant 0 : index
    %c0_17 = arith.constant 0 : index
    %10 = vector.load %arg1[%c0_13, %c0_14, %c1_15, %c0_16, %c0_17] : memref<1x9x2x9x8xbf16, #tpu.memory_space<vmem>>, vector<1x8x1x8x8xbf16>
    %11 = vector.shape_cast %10 : vector<1x8x1x8x8xbf16> to vector<8x8x8xbf16>
    %c0_18 = arith.constant 0 : index
    %c0_19 = arith.constant 0 : index
    %c1_20 = arith.constant 1 : index
    %c1_21 = arith.constant 1 : index
    %c0_22 = arith.constant 0 : index
    %12 = vector.load %arg1[%c0_18, %c0_19, %c1_20, %c1_21, %c0_22] : memref<1x9x2x9x8xbf16, #tpu.memory_space<vmem>>, vector<1x8x1x8x4xbf16>
    %13 = vector.shape_cast %12 : vector<1x8x1x8x4xbf16> to vector<8x8x4xbf16>
    %14 = tpu.concatenate %11, %13 in 2 : vector<8x8x8xbf16>, vector<8x8x4xbf16> -> vector<8x8x12xbf16>
    %15 = vector.shape_cast %14 : vector<8x8x12xbf16> to vector<64x12xbf16>
    %c1_23 = arith.constant 1 : index
    %c0_24 = arith.constant 0 : index
    %c0_25 = arith.constant 0 : index
    %16 = vector.load %arg2[%c1_23, %c0_24, %c0_25] : memref<3x12x8xbf16, #tpu.memory_space<vmem>>, vector<1x12x8xbf16>
    %17 = vector.shape_cast %16 : vector<1x12x8xbf16> to vector<12x8xbf16>
    %cst_26 = arith.constant dense<0.000000e+00> : vector<64x8xf32>
    %18 = tpu.matmul %15, %17, %cst_26 {dimension_numbers = #tpu.dot_dimension_numbers<[1], [0], [0], [1], [0, 0, 1, 1], [], []>} : vector<64x12xbf16>, vector<12x8xbf16>, vector<64x8xf32> -> vector<64x8xf32>
    %c0_27 = arith.constant 0 : index
    %c0_28 = arith.constant 0 : index
    %19 = vector.load %arg13[%c0_27, %c0_28] : memref<64x8xf32, #tpu.memory_space<vmem>>, vector<64x8xf32>
    %20 = arith.addf %19, %18 : vector<64x8xf32>
    %c0_29 = arith.constant 0 : index
    %c0_30 = arith.constant 0 : index
    %21 = vector.load %arg13[%c0_29, %c0_30] : memref<64x8xf32, #tpu.memory_space<vmem>>, vector<64x8xf32>
    tpu.vector_store %arg13[%c0_29, %c0_30], %20 {strides = array<i32>} : memref<64x8xf32, #tpu.memory_space<vmem>>, vector<64x8xf32>,
    %c0_31 = arith.constant 0 : index
    %c1_32 = arith.constant 1 : index
    %c0_33 = arith.constant 0 : index
    %c0_34 = arith.constant 0 : index
    %c0_35 = arith.constant 0 : index
    %22 = vector.load %arg1[%c0_31, %c1_32, %c0_33, %c0_34, %c0_35] : memref<1x9x2x9x8xbf16, #tpu.memory_space<vmem>>, vector<1x8x1x8x8xbf16>
    %23 = vector.shape_cast %22 : vector<1x8x1x8x8xbf16> to vector<8x8x8xbf16>
    %c0_36 = arith.constant 0 : index
    %c1_37 = arith.constant 1 : index
    %c0_38 = arith.constant 0 : index
    %c1_39 = arith.constant 1 : index
    %c0_40 = arith.constant 0 : index
    %24 = vector.load %arg1[%c0_36, %c1_37, %c0_38, %c1_39, %c0_40] : memref<1x9x2x9x8xbf16, #tpu.memory_space<vmem>>, vector<1x8x1x8x4xbf16>
    %25 = vector.shape_cast %24 : vector<1x8x1x8x4xbf16> to vector<8x8x4xbf16>
    %26 = tpu.concatenate %23, %25 in 2 : vector<8x8x8xbf16>, vector<8x8x4xbf16> -> vector<8x8x12xbf16>
    %27 = vector.shape_cast %26 : vector<8x8x12xbf16> to vector<64x12xbf16>
    %c2 = arith.constant 2 : index
    %c0_41 = arith.constant 0 : index
    %c0_42 = arith.constant 0 : index
    %28 = vector.load %arg2[%c2, %c0_41, %c0_42] : memref<3x12x8xbf16, #tpu.memory_space<vmem>>, vector<1x12x8xbf16>
    %29 = vector.shape_cast %28 : vector<1x12x8xbf16> to vector<12x8xbf16>
    %cst_43 = arith.constant dense<0.000000e+00> : vector<64x8xf32>
    %30 = tpu.matmul %27, %29, %cst_43 {dimension_numbers = #tpu.dot_dimension_numbers<[1], [0], [0], [1], [0, 0, 1, 1], [], []>} : vector<64x12xbf16>, vector<12x8xbf16>, vector<64x8xf32> -> vector<64x8xf32>
    %c0_44 = arith.constant 0 : index
    %c0_45 = arith.constant 0 : index
    %31 = vector.load %arg13[%c0_44, %c0_45] : memref<64x8xf32, #tpu.memory_space<vmem>>, vector<64x8xf32>
    %32 = arith.addf %31, %30 : vector<64x8xf32>
    %c0_46 = arith.constant 0 : index
    %c0_47 = arith.constant 0 : index
    %33 = vector.load %arg13[%c0_46, %c0_47] : memref<64x8xf32, #tpu.memory_space<vmem>>, vector<64x8xf32>
    tpu.vector_store %arg13[%c0_46, %c0_47], %32 {strides = array<i32>} : memref<64x8xf32, #tpu.memory_space<vmem>>, vector<64x8xf32>,
    %c0_48 = arith.constant 0 : index
    %c0_49 = arith.constant 0 : index
    %34 = vector.load %arg13[%c0_48, %c0_49] : memref<64x8xf32, #tpu.memory_space<vmem>>, vector<64x8xf32>
    %c0_50 = arith.constant 0 : index
    %c0_51 = arith.constant 0 : index
    %35 = vector.load %arg3[%c0_50, %c0_51] : memref<1x8xf32, #tpu.memory_space<vmem>>, vector<1x8xf32>
    %36 = vector.broadcast %35 : vector<1x8xf32> to vector<64x8xf32>
    %37 = arith.mulf %34, %36 : vector<64x8xf32>
    %c0_52 = arith.constant 0 : index
    %c0_53 = arith.constant 0 : index
    %38 = vector.load %arg4[%c0_52, %c0_53] : memref<1x8xf32, #tpu.memory_space<vmem>>, vector<1x8xf32>
    %39 = vector.broadcast %38 : vector<1x8xf32> to vector<64x8xf32>
    %40 = arith.addf %37, %39 : vector<64x8xf32>
    %cst_54 = arith.constant 0.000000e+00 : f32
    %41 = vector.broadcast %cst_54 : f32 to vector<64x8xf32>
    %42 = arith.maximumf %40, %41 : vector<64x8xf32>
    %cst_55 = arith.constant 0.000000e+00 : bf16
    %43 = vector.broadcast %cst_55 : bf16 to vector<8x1x8xbf16>
    %cst_56 = arith.constant 0.000000e+00 : bf16
    %44 = vector.broadcast %cst_56 : bf16 to vector<10x8xbf16>
    %c0_57 = arith.constant 0 : index
    %c0_58 = arith.constant 0 : index
    %c0_59 = arith.constant 0 : index
    %45 = vector.load %arg12[%c0_57, %c0_58, %c0_59] : memref<10x10x8xbf16, #tpu.memory_space<vmem>>, vector<1x10x8xbf16>
    %46 = vector.shape_cast %45 : vector<1x10x8xbf16> to vector<10x8xbf16>
    %47 = vector.shape_cast %44 : vector<10x8xbf16> to vector<1x10x8xbf16>
    tpu.vector_store %arg12[%c0_57, %c0_58, %c0_59], %47 {strides = array<i32>} : memref<10x10x8xbf16, #tpu.memory_space<vmem>>, vector<1x10x8xbf16>,
    %c9 = arith.constant 9 : index
    %c0_60 = arith.constant 0 : index
    %c0_61 = arith.constant 0 : index
    %48 = vector.load %arg12[%c9, %c0_60, %c0_61] : memref<10x10x8xbf16, #tpu.memory_space<vmem>>, vector<1x10x8xbf16>
    %49 = vector.shape_cast %48 : vector<1x10x8xbf16> to vector<10x8xbf16>
    %50 = vector.shape_cast %44 : vector<10x8xbf16> to vector<1x10x8xbf16>
    tpu.vector_store %arg12[%c9, %c0_60, %c0_61], %50 {strides = array<i32>} : memref<10x10x8xbf16, #tpu.memory_space<vmem>>, vector<1x10x8xbf16>,
    %51 = vector.shape_cast %42 : vector<64x8xf32> to vector<8x8x8xf32>
    %52 = arith.truncf %51 : vector<8x8x8xf32> to vector<8x8x8xbf16>
    %53 = tpu.concatenate %43, %52, %43 in 1 : vector<8x1x8xbf16>, vector<8x8x8xbf16>, vector<8x1x8xbf16> -> vector<8x10x8xbf16>
    %c1_62 = arith.constant 1 : index
    %c0_63 = arith.constant 0 : index
    %c0_64 = arith.constant 0 : index
    %54 = vector.load %arg12[%c1_62, %c0_63, %c0_64] : memref<10x10x8xbf16, #tpu.memory_space<vmem>>, vector<8x10x8xbf16>
    tpu.vector_store %arg12[%c1_62, %c0_63, %c0_64], %53 {strides = array<i32>} : memref<10x10x8xbf16, #tpu.memory_space<vmem>>, vector<8x10x8xbf16>,
    %c0_65 = arith.constant 0 : index
    %c0_66 = arith.constant 0 : index
    %c0_67 = arith.constant 0 : index
    %55 = vector.load %arg12[%c0_65, %c0_66, %c0_67] : memref<10x10x8xbf16, #tpu.memory_space<vmem>>, vector<8x10x8xbf16>
    %56 = vector.extract_strided_slice %55 {offsets = [0, 0, 0], sizes = [8, 8, 8], strides = [1, 1, 1]} : vector<8x10x8xbf16> to vector<8x8x8xbf16>
    %57 = vector.extract_strided_slice %55 {offsets = [0, 1, 0], sizes = [8, 8, 8], strides = [1, 1, 1]} : vector<8x10x8xbf16> to vector<8x8x8xbf16>
    %58 = vector.extract_strided_slice %55 {offsets = [0, 2, 0], sizes = [8, 8, 8], strides = [1, 1, 1]} : vector<8x10x8xbf16> to vector<8x8x8xbf16>
    %59 = tpu.concatenate %56, %57, %58 in 2 : vector<8x8x8xbf16>, vector<8x8x8xbf16>, vector<8x8x8xbf16> -> vector<8x8x24xbf16>
    %60 = vector.shape_cast %59 : vector<8x8x24xbf16> to vector<64x24xbf16>
    %c0_68 = arith.constant 0 : index
    %c0_69 = arith.constant 0 : index
    %c0_70 = arith.constant 0 : index
    %61 = vector.load %arg5[%c0_68, %c0_69, %c0_70] : memref<3x24x8xbf16, #tpu.memory_space<vmem>>, vector<1x24x8xbf16>
    %62 = vector.shape_cast %61 : vector<1x24x8xbf16> to vector<24x8xbf16>
    %cst_71 = arith.constant dense<0.000000e+00> : vector<64x8xf32>
    %63 = tpu.matmul %60, %62, %cst_71 {dimension_numbers = #tpu.dot_dimension_numbers<[1], [0], [0], [1], [0, 0, 1, 1], [], []>} : vector<64x24xbf16>, vector<24x8xbf16>, vector<64x8xf32> -> vector<64x8xf32>
    %c0_72 = arith.constant 0 : index
    %c0_73 = arith.constant 0 : index
    %64 = vector.load %arg13[%c0_72, %c0_73] : memref<64x8xf32, #tpu.memory_space<vmem>>, vector<64x8xf32>
    tpu.vector_store %arg13[%c0_72, %c0_73], %63 {strides = array<i32>} : memref<64x8xf32, #tpu.memory_space<vmem>>, vector<64x8xf32>,
    %c1_74 = arith.constant 1 : index
    %c0_75 = arith.constant 0 : index
    %c0_76 = arith.constant 0 : index
    %65 = vector.load %arg12[%c1_74, %c0_75, %c0_76] : memref<10x10x8xbf16, #tpu.memory_space<vmem>>, vector<8x10x8xbf16>
    %66 = vector.extract_strided_slice %65 {offsets = [0, 0, 0], sizes = [8, 8, 8], strides = [1, 1, 1]} : vector<8x10x8xbf16> to vector<8x8x8xbf16>
    %67 = vector.extract_strided_slice %65 {offsets = [0, 1, 0], sizes = [8, 8, 8], strides = [1, 1, 1]} : vector<8x10x8xbf16> to vector<8x8x8xbf16>
    %68 = vector.extract_strided_slice %65 {offsets = [0, 2, 0], sizes = [8, 8, 8], strides = [1, 1, 1]} : vector<8x10x8xbf16> to vector<8x8x8xbf16>
    %69 = tpu.concatenate %66, %67, %68 in 2 : vector<8x8x8xbf16>, vector<8x8x8xbf16>, vector<8x8x8xbf16> -> vector<8x8x24xbf16>
    %70 = vector.shape_cast %69 : vector<8x8x24xbf16> to vector<64x24xbf16>
    %c1_77 = arith.constant 1 : index
    %c0_78 = arith.constant 0 : index
    %c0_79 = arith.constant 0 : index
    %71 = vector.load %arg5[%c1_77, %c0_78, %c0_79] : memref<3x24x8xbf16, #tpu.memory_space<vmem>>, vector<1x24x8xbf16>
    %72 = vector.shape_cast %71 : vector<1x24x8xbf16> to vector<24x8xbf16>
    %cst_80 = arith.constant dense<0.000000e+00> : vector<64x8xf32>
    %73 = tpu.matmul %70, %72, %cst_80 {dimension_numbers = #tpu.dot_dimension_numbers<[1], [0], [0], [1], [0, 0, 1, 1], [], []>} : vector<64x24xbf16>, vector<24x8xbf16>, vector<64x8xf32> -> vector<64x8xf32>
    %c0_81 = arith.constant 0 : index
    %c0_82 = arith.constant 0 : index
    %74 = vector.load %arg13[%c0_81, %c0_82] : memref<64x8xf32, #tpu.memory_space<vmem>>, vector<64x8xf32>
    %75 = arith.addf %74, %73 : vector<64x8xf32>
    %c0_83 = arith.constant 0 : index
    %c0_84 = arith.constant 0 : index
    %76 = vector.load %arg13[%c0_83, %c0_84] : memref<64x8xf32, #tpu.memory_space<vmem>>, vector<64x8xf32>
    tpu.vector_store %arg13[%c0_83, %c0_84], %75 {strides = array<i32>} : memref<64x8xf32, #tpu.memory_space<vmem>>, vector<64x8xf32>,
    %c2_85 = arith.constant 2 : index
    %c0_86 = arith.constant 0 : index
    %c0_87 = arith.constant 0 : index
    %77 = vector.load %arg12[%c2_85, %c0_86, %c0_87] : memref<10x10x8xbf16, #tpu.memory_space<vmem>>, vector<8x10x8xbf16>
    %78 = vector.extract_strided_slice %77 {offsets = [0, 0, 0], sizes = [8, 8, 8], strides = [1, 1, 1]} : vector<8x10x8xbf16> to vector<8x8x8xbf16>
    %79 = vector.extract_strided_slice %77 {offsets = [0, 1, 0], sizes = [8, 8, 8], strides = [1, 1, 1]} : vector<8x10x8xbf16> to vector<8x8x8xbf16>
    %80 = vector.extract_strided_slice %77 {offsets = [0, 2, 0], sizes = [8, 8, 8], strides = [1, 1, 1]} : vector<8x10x8xbf16> to vector<8x8x8xbf16>
    %81 = tpu.concatenate %78, %79, %80 in 2 : vector<8x8x8xbf16>, vector<8x8x8xbf16>, vector<8x8x8xbf16> -> vector<8x8x24xbf16>
    %82 = vector.shape_cast %81 : vector<8x8x24xbf16> to vector<64x24xbf16>
    %c2_88 = arith.constant 2 : index
    %c0_89 = arith.constant 0 : index
    %c0_90 = arith.constant 0 : index
    %83 = vector.load %arg5[%c2_88, %c0_89, %c0_90] : memref<3x24x8xbf16, #tpu.memory_space<vmem>>, vector<1x24x8xbf16>
    %84 = vector.shape_cast %83 : vector<1x24x8xbf16> to vector<24x8xbf16>
    %cst_91 = arith.constant dense<0.000000e+00> : vector<64x8xf32>
    %85 = tpu.matmul %82, %84, %cst_91 {dimension_numbers = #tpu.dot_dimension_numbers<[1], [0], [0], [1], [0, 0, 1, 1], [], []>} : vector<64x24xbf16>, vector<24x8xbf16>, vector<64x8xf32> -> vector<64x8xf32>
    %c0_92 = arith.constant 0 : index
    %c0_93 = arith.constant 0 : index
    %86 = vector.load %arg13[%c0_92, %c0_93] : memref<64x8xf32, #tpu.memory_space<vmem>>, vector<64x8xf32>
    %87 = arith.addf %86, %85 : vector<64x8xf32>
    %c0_94 = arith.constant 0 : index
    %c0_95 = arith.constant 0 : index
    %88 = vector.load %arg13[%c0_94, %c0_95] : memref<64x8xf32, #tpu.memory_space<vmem>>, vector<64x8xf32>
    tpu.vector_store %arg13[%c0_94, %c0_95], %87 {strides = array<i32>} : memref<64x8xf32, #tpu.memory_space<vmem>>, vector<64x8xf32>,
    %c0_96 = arith.constant 0 : index
    %c0_97 = arith.constant 0 : index
    %89 = vector.load %arg13[%c0_96, %c0_97] : memref<64x8xf32, #tpu.memory_space<vmem>>, vector<64x8xf32>
    %c0_98 = arith.constant 0 : index
    %c0_99 = arith.constant 0 : index
    %90 = vector.load %arg6[%c0_98, %c0_99] : memref<1x8xf32, #tpu.memory_space<vmem>>, vector<1x8xf32>
    %91 = vector.broadcast %90 : vector<1x8xf32> to vector<64x8xf32>
    %92 = arith.mulf %89, %91 : vector<64x8xf32>
    %c0_100 = arith.constant 0 : index
    %c0_101 = arith.constant 0 : index
    %93 = vector.load %arg7[%c0_100, %c0_101] : memref<1x8xf32, #tpu.memory_space<vmem>>, vector<1x8xf32>
    %94 = vector.broadcast %93 : vector<1x8xf32> to vector<64x8xf32>
    %95 = arith.addf %92, %94 : vector<64x8xf32>
    %c0_102 = arith.constant 0 : index
    %c0_103 = arith.constant 0 : index
    %c1_104 = arith.constant 1 : index
    %c0_105 = arith.constant 0 : index
    %c4 = arith.constant 4 : index
    %96 = vector.load %arg1[%c0_102, %c0_103, %c1_104, %c0_105, %c4] : memref<1x9x2x9x8xbf16, #tpu.memory_space<vmem>>, vector<1x8x1x8x4xbf16>
    %97 = vector.shape_cast %96 : vector<1x8x1x8x4xbf16> to vector<8x8x4xbf16>
    %98 = vector.shape_cast %97 : vector<8x8x4xbf16> to vector<64x4xbf16>
    %c0_106 = arith.constant 0 : index
    %c0_107 = arith.constant 0 : index
    %99 = vector.load %arg8[%c0_106, %c0_107] : memref<4x8xbf16, #tpu.memory_space<vmem>>, vector<4x8xbf16>
    %cst_108 = arith.constant dense<0.000000e+00> : vector<64x8xf32>
    %100 = tpu.matmul %98, %99, %cst_108 {dimension_numbers = #tpu.dot_dimension_numbers<[1], [0], [0], [1], [0, 0, 1, 1], [], []>} : vector<64x4xbf16>, vector<4x8xbf16>, vector<64x8xf32> -> vector<64x8xf32>
    %c0_109 = arith.constant 0 : index
    %c0_110 = arith.constant 0 : index
    %101 = vector.load %arg9[%c0_109, %c0_110] : memref<1x8xf32, #tpu.memory_space<vmem>>, vector<1x8xf32>
    %102 = vector.broadcast %101 : vector<1x8xf32> to vector<64x8xf32>
    %103 = arith.mulf %100, %102 : vector<64x8xf32>
    %c0_111 = arith.constant 0 : index
    %c0_112 = arith.constant 0 : index
    %104 = vector.load %arg10[%c0_111, %c0_112] : memref<1x8xf32, #tpu.memory_space<vmem>>, vector<1x8xf32>
    %105 = vector.broadcast %104 : vector<1x8xf32> to vector<64x8xf32>
    %106 = arith.addf %103, %105 : vector<64x8xf32>
    %107 = arith.addf %95, %106 : vector<64x8xf32>
    %cst_113 = arith.constant 0.000000e+00 : f32
    %108 = vector.broadcast %cst_113 : f32 to vector<64x8xf32>
    %109 = arith.maximumf %107, %108 : vector<64x8xf32>
    %c0_114 = arith.constant 0 : index
    %c0_115 = arith.constant 0 : index
    %c0_116 = arith.constant 0 : index
    %110 = vector.load %arg11[%c0_114, %c0_115, %c0_116] : memref<1x64x8xf32, #tpu.memory_space<vmem>>, vector<1x64x8xf32>
    %111 = vector.shape_cast %110 : vector<1x64x8xf32> to vector<64x8xf32>
    %112 = vector.shape_cast %109 : vector<64x8xf32> to vector<1x64x8xf32>
    tpu.vector_store %arg11[%c0_114, %c0_115, %c0_116], %112 {strides = array<i32>} : memref<1x64x8xf32, #tpu.memory_space<vmem>>, vector<1x64x8xf32>,
    return
  }
  func.func @transform_0(%arg0: i32) -> (i32, i32, i32, i32, i32) {
    %c0_i32 = arith.constant 0 : i32
    %c0_i32_0 = arith.constant 0 : i32
    %c0_i32_1 = arith.constant 0 : i32
    %c0_i32_2 = arith.constant 0 : i32
    %c0_i32_3 = arith.constant 0 : i32
    return %arg0, %c0_i32, %c0_i32_0, %c0_i32_1, %c0_i32_2 : i32, i32, i32, i32, i32
  }
  func.func @transform_1(%arg0: i32) -> (i32, i32, i32) {
    %c0_i32 = arith.constant 0 : i32
    %c0_i32_0 = arith.constant 0 : i32
    %c0_i32_1 = arith.constant 0 : i32
    %c0_i32_2 = arith.constant 0 : i32
    return %c0_i32, %c0_i32_0, %c0_i32_1 : i32, i32, i32
  }
  func.func @transform_2(%arg0: i32) -> (i32, i32) {
    %c0_i32 = arith.constant 0 : i32
    %c0_i32_0 = arith.constant 0 : i32
    %c0_i32_1 = arith.constant 0 : i32
    return %c0_i32, %c0_i32_0 : i32, i32
  }
  func.func @transform_3(%arg0: i32) -> (i32, i32) {
    %c0_i32 = arith.constant 0 : i32
    %c0_i32_0 = arith.constant 0 : i32
    %c0_i32_1 = arith.constant 0 : i32
    return %c0_i32, %c0_i32_0 : i32, i32
  }
  func.func @transform_4(%arg0: i32) -> (i32, i32, i32) {
    %c0_i32 = arith.constant 0 : i32
    %c0_i32_0 = arith.constant 0 : i32
    %c0_i32_1 = arith.constant 0 : i32
    %c0_i32_2 = arith.constant 0 : i32
    return %c0_i32, %c0_i32_0, %c0_i32_1 : i32, i32, i32
  }
  func.func @transform_5(%arg0: i32) -> (i32, i32) {
    %c0_i32 = arith.constant 0 : i32
    %c0_i32_0 = arith.constant 0 : i32
    %c0_i32_1 = arith.constant 0 : i32
    return %c0_i32, %c0_i32_0 : i32, i32
  }
  func.func @transform_6(%arg0: i32) -> (i32, i32) {
    %c0_i32 = arith.constant 0 : i32
    %c0_i32_0 = arith.constant 0 : i32
    %c0_i32_1 = arith.constant 0 : i32
    return %c0_i32, %c0_i32_0 : i32, i32
  }
  func.func @transform_7(%arg0: i32) -> (i32, i32) {
    %c0_i32 = arith.constant 0 : i32
    %c0_i32_0 = arith.constant 0 : i32
    %c0_i32_1 = arith.constant 0 : i32
    return %c0_i32, %c0_i32_0 : i32, i32
  }
  func.func @transform_8(%arg0: i32) -> (i32, i32) {
    %c0_i32 = arith.constant 0 : i32
    %c0_i32_0 = arith.constant 0 : i32
    %c0_i32_1 = arith.constant 0 : i32
    return %c0_i32, %c0_i32_0 : i32, i32
  }
  func.func @transform_9(%arg0: i32) -> (i32, i32) {
    %c0_i32 = arith.constant 0 : i32
    %c0_i32_0 = arith.constant 0 : i32
    %c0_i32_1 = arith.constant 0 : i32
    return %c0_i32, %c0_i32_0 : i32, i32
  }
  func.func @transform_10(%arg0: i32) -> (i32, i32, i32) {
    %c0_i32 = arith.constant 0 : i32
    %c0_i32_0 = arith.constant 0 : i32
    %c0_i32_1 = arith.constant 0 : i32
    return %arg0, %c0_i32, %c0_i32_0 : i32, i32, i32
  }
}

</mosaic_0001>

<llo_original>
// kernel: tpu_custom_call.1
$region0: #{tpu_custom_call.1}
  #allocation0 [shape = 'u32[]', space=smem, size = 0x4, offset = 0x4, fixed_abs, tag = 'smem constant byte address 0x4 - core index']
  #allocation1 [shape = 'u32[144,128]{1,0:T(1,128)}', space=vmem, size = 0x12000, scoped, tag = 'internal scratch']
  #allocation2 [shape = 'bf16[10,10,8]{2,1,0:T(8,128)(2,1)}', space=vmem, size = 0xa000, scoped, tag = 'scratch operand']
  #allocation3 [shape = 'f32[64,8]{1,0:T(8,128)}', space=vmem, size = 0x8000, scoped, tag = 'scratch operand']
  %s0 = inlined_call_operand.vmem [shape: bf16[2,9,2,9,8], index: 0, kind: input, shape index: {}]
  %s1 = inlined_call_operand.vmem [shape: bf16[3,12,8], index: 1, kind: input, shape index: {}]
  %s2 = inlined_call_operand.vmem [shape: f32[1,8], index: 2, kind: input, shape index: {}]
  %s3 = inlined_call_operand.vmem [shape: f32[1,8], index: 3, kind: input, shape index: {}]
  %s4 = inlined_call_operand.vmem [shape: bf16[3,24,8], index: 4, kind: input, shape index: {}]
  %s5 = inlined_call_operand.vmem [shape: f32[1,8], index: 5, kind: input, shape index: {}]
  %s6 = inlined_call_operand.vmem [shape: f32[1,8], index: 6, kind: input, shape index: {}]
  %s7 = inlined_call_operand.vmem [shape: bf16[4,8], index: 7, kind: input, shape index: {}]
  %s8 = inlined_call_operand.vmem [shape: f32[1,8], index: 8, kind: input, shape index: {}]
  %s9 = inlined_call_operand.vmem [shape: f32[1,8], index: 9, kind: input, shape index: {}]
  %s10 = inlined_call_operand.vmem [shape: f32[2,64,8], index: 10, kind: output, shape index: {}]
  %s11 = sld [smem:[#allocation0]]
  $region73: #{tpu_custom_call.1} parent=0
    _
  %s13 = ssub.s32 1, %s11
  %s14 = scalar_select 0, %s13, %s11
  loop: start=0, step=1, limit=4
  $region2: #{tpu_custom_call.1} parent=0 // loop_pre_header
    _
  $region3: #{tpu_custom_call.1} parent=0 // loop_header
    %s16 = sphi 0, %s20
    %p17 = scmp.ge.s32.totalorder %s16, 4
    %s26 = sphi 0, %s28
    %s29 = sphi 0, %s26
    %s30 = sphi 0, %s29
    %s46 = sphi 0, %s30
    %s50 = sphi 0, %s50
    %s52 = sphi 0, %s50
    %s53 = sphi 0, %s52
    %s67 = sphi 0, %s53
    %s71 = sphi 0, %s71
    %s73 = sphi 0, %s71
    %s74 = sphi 0, %s73
    %s88 = sphi 0, %s74
    %s92 = sphi 0, %s92
    %s94 = sphi 0, %s92
    %s95 = sphi 0, %s94
    %s109 = sphi 0, %s95
    %s113 = sphi 0, %s113
    %s115 = sphi 0, %s113
    %s116 = sphi 0, %s115
    %s130 = sphi 0, %s116
    %s134 = sphi 0, %s134
    %s136 = sphi 0, %s134
    %s137 = sphi 0, %s136
    %s151 = sphi 0, %s137
    %s155 = sphi 0, %s155
    %s157 = sphi 0, %s155
    %s158 = sphi 0, %s157
    %s172 = sphi 0, %s158
    %s176 = sphi 0, %s176
    %s178 = sphi 0, %s176
    %s179 = sphi 0, %s178
    %s193 = sphi 0, %s179
    %s197 = sphi 0, %s197
    %s199 = sphi 0, %s197
    %s200 = sphi 0, %s199
    %s214 = sphi 0, %s200
    %s218 = sphi 0, %s218
    %s220 = sphi 0, %s218
    %s221 = sphi 0, %s220
    %s235 = sphi 0, %s221
    %s241 = sphi 0, %s243
    %s244 = sphi 0, %s241
    %s245 = sphi 0, %s244
    %s261 = sphi 0, %s245
  $region4: #{tpu_custom_call.1} parent=0 // loop_header_branch
    %19 = sbr.rel (%p17) target = $region8
  $region5: #{tpu_custom_call.1} parent=0 // loop_body
    %s21 = ssub.s32 %s16, 1
    %s22 = ssub.s32 %s16, 2
    %s23 = sadd.s32 %s16, 1
    %s24 = ssub.s32 %s16, %s23
    %p25 = scmp.eq.s32.totalorder %s24, 0
    %s27 = sadd.s32 %s26, 1
    %s28 = scalar_select %p25, %s26, %s27
    %p31 = pneg %p25
    %p32 = scmp.eq.s32.totalorder %s16, 1
    %p33 = por %p31, %p32
    %p34 = scmp.ne.s32.totalorder %s26, %s29
    %p35 = scmp.eq.s32.totalorder %s16, 0
    %p36 = por %p34, %p35
    %p37 = scmp.ne.s32.totalorder %s26, %s29
    %p38 = scmp.eq.s32.totalorder %s21, 1
    %p39 = por %p37, %p38
    %p40 = scmp.ne.s32.totalorder %s29, %s30
    %p41 = scmp.eq.s32.totalorder %s21, 0
    %p42 = por %p40, %p41
    %p43 = scmp.ne.s32.totalorder %s29, %s30
    %p44 = scmp.eq.s32.totalorder %s22, 1
    %p45 = por %p43, %p44
    %p47 = scmp.ne.s32.totalorder %s30, %s46
    %p48 = scmp.eq.s32.totalorder %s22, 0
    %p49 = por %p47, %p48
    %s51 = sadd.s32 %s50, 1
    %p54 = scmp.eq.s32.totalorder %s16, 1
    %p55 = scmp.ne.s32.totalorder %s50, %s52
    %p56 = scmp.eq.s32.totalorder %s16, 0
    %p57 = por %p55, %p56
    %p58 = scmp.ne.s32.totalorder %s50, %s52
    %p59 = scmp.eq.s32.totalorder %s21, 1
    %p60 = por %p58, %p59
    %p61 = scmp.ne.s32.totalorder %s52, %s53
    %p62 = scmp.eq.s32.totalorder %s21, 0
    %p63 = por %p61, %p62
    %p64 = scmp.ne.s32.totalorder %s52, %s53
    %p65 = scmp.eq.s32.totalorder %s22, 1
    %p66 = por %p64, %p65
    %p68 = scmp.ne.s32.totalorder %s53, %s67
    %p69 = scmp.eq.s32.totalorder %s22, 0
    %p70 = por %p68, %p69
    %s72 = sadd.s32 %s71, 1
    %p75 = scmp.eq.s32.totalorder %s16, 1
    %p76 = scmp.ne.s32.totalorder %s71, %s73
    %p77 = scmp.eq.s32.totalorder %s16, 0
    %p78 = por %p76, %p77
    %p79 = scmp.ne.s32.totalorder %s71, %s73
    %p80 = scmp.eq.s32.totalorder %s21, 1
    %p81 = por %p79, %p80
    %p82 = scmp.ne.s32.totalorder %s73, %s74
    %p83 = scmp.eq.s32.totalorder %s21, 0
    %p84 = por %p82, %p83
    %p85 = scmp.ne.s32.totalorder %s73, %s74
    %p86 = scmp.eq.s32.totalorder %s22, 1
    %p87 = por %p85, %p86
    %p89 = scmp.ne.s32.totalorder %s74, %s88
    %p90 = scmp.eq.s32.totalorder %s22, 0
    %p91 = por %p89, %p90
    %s93 = sadd.s32 %s92, 1
    %p96 = scmp.eq.s32.totalorder %s16, 1
    %p97 = scmp.ne.s32.totalorder %s92, %s94
    %p98 = scmp.eq.s32.totalorder %s16, 0
    %p99 = por %p97, %p98
    %p100 = scmp.ne.s32.totalorder %s92, %s94
    %p101 = scmp.eq.s32.totalorder %s21, 1
    %p102 = por %p100, %p101
    %p103 = scmp.ne.s32.totalorder %s94, %s95
    %p104 = scmp.eq.s32.totalorder %s21, 0
    %p105 = por %p103, %p104
    %p106 = scmp.ne.s32.totalorder %s94, %s95
    %p107 = scmp.eq.s32.totalorder %s22, 1
    %p108 = por %p106, %p107
    %p110 = scmp.ne.s32.totalorder %s95, %s109
    %p111 = scmp.eq.s32.totalorder %s22, 0
    %p112 = por %p110, %p111
    %s114 = sadd.s32 %s113, 1
    %p117 = scmp.eq.s32.totalorder %s16, 1
    %p118 = scmp.ne.s32.totalorder %s113, %s115
    %p119 = scmp.eq.s32.totalorder %s16, 0
    %p120 = por %p118, %p119
    %p121 = scmp.ne.s32.totalorder %s113, %s115
    %p122 = scmp.eq.s32.totalorder %s21, 1
    %p123 = por %p121, %p122
    %p124 = scmp.ne.s32.totalorder %s115, %s116
    %p125 = scmp.eq.s32.totalorder %s21, 0
    %p126 = por %p124, %p125
    %p127 = scmp.ne.s32.totalorder %s115, %s116
    %p128 = scmp.eq.s32.totalorder %s22, 1
    %p129 = por %p127, %p128
    %p131 = scmp.ne.s32.totalorder %s116, %s130
    %p132 = scmp.eq.s32.totalorder %s22, 0
    %p133 = por %p131, %p132
    %s135 = sadd.s32 %s134, 1
    %p138 = scmp.eq.s32.totalorder %s16, 1
    %p139 = scmp.ne.s32.totalorder %s134, %s136
    %p140 = scmp.eq.s32.totalorder %s16, 0
    %p141 = por %p139, %p140
    %p142 = scmp.ne.s32.totalorder %s134, %s136
    %p143 = scmp.eq.s32.totalorder %s21, 1
    %p144 = por %p142, %p143
    %p145 = scmp.ne.s32.totalorder %s136, %s137
    %p146 = scmp.eq.s32.totalorder %s21, 0
    %p147 = por %p145, %p146
    %p148 = scmp.ne.s32.totalorder %s136, %s137
    %p149 = scmp.eq.s32.totalorder %s22, 1
    %p150 = por %p148, %p149
    %p152 = scmp.ne.s32.totalorder %s137, %s151
    %p153 = scmp.eq.s32.totalorder %s22, 0
    %p154 = por %p152, %p153
    %s156 = sadd.s32 %s155, 1
    %p159 = scmp.eq.s32.totalorder %s16, 1
    %p160 = scmp.ne.s32.totalorder %s155, %s157
    %p161 = scmp.eq.s32.totalorder %s16, 0
    %p162 = por %p160, %p161
    %p163 = scmp.ne.s32.totalorder %s155, %s157
    %p164 = scmp.eq.s32.totalorder %s21, 1
    %p165 = por %p163, %p164
    %p166 = scmp.ne.s32.totalorder %s157, %s158
    %p167 = scmp.eq.s32.totalorder %s21, 0
    %p168 = por %p166, %p167
    %p169 = scmp.ne.s32.totalorder %s157, %s158
    %p170 = scmp.eq.s32.totalorder %s22, 1
    %p171 = por %p169, %p170
    %p173 = scmp.ne.s32.totalorder %s158, %s172
    %p174 = scmp.eq.s32.totalorder %s22, 0
    %p175 = por %p173, %p174
    %s177 = sadd.s32 %s176, 1
    %p180 = scmp.eq.s32.totalorder %s16, 1
    %p181 = scmp.ne.s32.totalorder %s176, %s178
    %p182 = scmp.eq.s32.totalorder %s16, 0
    %p183 = por %p181, %p182
    %p184 = scmp.ne.s32.totalorder %s176, %s178
    %p185 = scmp.eq.s32.totalorder %s21, 1
    %p186 = por %p184, %p185
    %p187 = scmp.ne.s32.totalorder %s178, %s179
    %p188 = scmp.eq.s32.totalorder %s21, 0
    %p189 = por %p187, %p188
    %p190 = scmp.ne.s32.totalorder %s178, %s179
    %p191 = scmp.eq.s32.totalorder %s22, 1
    %p192 = por %p190, %p191
    %p194 = scmp.ne.s32.totalorder %s179, %s193
    %p195 = scmp.eq.s32.totalorder %s22, 0
    %p196 = por %p194, %p195
    %s198 = sadd.s32 %s197, 1
    %p201 = scmp.eq.s32.totalorder %s16, 1
    %p202 = scmp.ne.s32.totalorder %s197, %s199
    %p203 = scmp.eq.s32.totalorder %s16, 0
    %p204 = por %p202, %p203
    %p205 = scmp.ne.s32.totalorder %s197, %s199
    %p206 = scmp.eq.s32.totalorder %s21, 1
    %p207 = por %p205, %p206
    %p208 = scmp.ne.s32.totalorder %s199, %s200
    %p209 = scmp.eq.s32.totalorder %s21, 0
    %p210 = por %p208, %p209
    %p211 = scmp.ne.s32.totalorder %s199, %s200
    %p212 = scmp.eq.s32.totalorder %s22, 1
    %p213 = por %p211, %p212
    %p215 = scmp.ne.s32.totalorder %s200, %s214
    %p216 = scmp.eq.s32.totalorder %s22, 0
    %p217 = por %p215, %p216
    %s219 = sadd.s32 %s218, 1
    %p222 = scmp.eq.s32.totalorder %s16, 1
    %p223 = scmp.ne.s32.totalorder %s218, %s220
    %p224 = scmp.eq.s32.totalorder %s16, 0
    %p225 = por %p223, %p224
    %p226 = scmp.ne.s32.totalorder %s218, %s220
    %p227 = scmp.eq.s32.totalorder %s21, 1
    %p228 = por %p226, %p227
    %p229 = scmp.ne.s32.totalorder %s220, %s221
    %p230 = scmp.eq.s32.totalorder %s21, 0
    %p231 = por %p229, %p230
    %p232 = scmp.ne.s32.totalorder %s220, %s221
    %p233 = scmp.eq.s32.totalorder %s22, 1
    %p234 = por %p232, %p233
    %p236 = scmp.ne.s32.totalorder %s221, %s235
    %p237 = scmp.eq.s32.totalorder %s22, 0
    %p238 = por %p236, %p237
    %s239 = ssub.s32 %s16, %s23
    %p240 = scmp.eq.s32.totalorder %s239, 0
    %s242 = sadd.s32 %s241, 1
    %s243 = scalar_select %p240, %s241, %s242
    %p246 = pneg %p240
    %p247 = scmp.eq.s32.totalorder %s16, 1
    %p248 = por %p246, %p247
    %p249 = scmp.ne.s32.totalorder %s241, %s244
    %p250 = scmp.eq.s32.totalorder %s16, 0
    %p251 = por %p249, %p250
    %p252 = scmp.ne.s32.totalorder %s241, %s244
    %p253 = scmp.eq.s32.totalorder %s21, 1
    %p254 = por %p252, %p253
    %p255 = scmp.ne.s32.totalorder %s244, %s245
    %p256 = scmp.eq.s32.totalorder %s21, 0
    %p257 = por %p255, %p256
    %p258 = scmp.ne.s32.totalorder %s244, %s245
    %p259 = scmp.eq.s32.totalorder %s22, 1
    %p260 = por %p258, %p259
    %p262 = scmp.ne.s32.totalorder %s245, %s261
    %p263 = scmp.eq.s32.totalorder %s22, 0
    %p264 = por %p262, %p263
    %p265 = scmp.le.s32.totalorder 1, %s16
    %p266 = scmp.lt.s32.totalorder %s16, 3
    %p267 = pnand %p265, %p266
    %p268 = pneg %p267
    // Predicated region
    $region9: #{tpu_custom_call.1} parent=5 // pred_check
      _
    $region10: #{tpu_custom_call.1} parent=5 // pred_check_branch
      %270 = sbr.rel (%p267) target = $region12
    $region11: #{tpu_custom_call.1} parent=5 // pred_region
      %s271 = ssub.s32 %s16, 1
      // Predicated region
      $region13: #{tpu_custom_call.1} parent=11 // pred_check
        %p272 = pneg %p63
      $region14: #{tpu_custom_call.1} parent=11 // pred_check_branch
        %274 = sbr.rel (%p272) target = $region16
      $region15: #{tpu_custom_call.1} parent=11 // pred_region
        _
      $region16: #{tpu_custom_call.1} parent=11 // pred_fallthru
        _
      // Predicated region
      $region17: #{tpu_custom_call.1} parent=11 // pred_check
        %p275 = pneg %p84
      $region18: #{tpu_custom_call.1} parent=11 // pred_check_branch
        %277 = sbr.rel (%p275) target = $region20
      $region19: #{tpu_custom_call.1} parent=11 // pred_region
        _
      $region20: #{tpu_custom_call.1} parent=11 // pred_fallthru
        _
      // Predicated region
      $region21: #{tpu_custom_call.1} parent=11 // pred_check
        %p278 = pneg %p105
      $region22: #{tpu_custom_call.1} parent=11 // pred_check_branch
        %280 = sbr.rel (%p278) target = $region24
      $region23: #{tpu_custom_call.1} parent=11 // pred_region
        _
      $region24: #{tpu_custom_call.1} parent=11 // pred_fallthru
        _
      // Predicated region
      $region25: #{tpu_custom_call.1} parent=11 // pred_check
        %p281 = pneg %p126
      $region26: #{tpu_custom_call.1} parent=11 // pred_check_branch
        %283 = sbr.rel (%p281) target = $region28
      $region27: #{tpu_custom_call.1} parent=11 // pred_region
        _
      $region28: #{tpu_custom_call.1} parent=11 // pred_fallthru
        _
      // Predicated region
      $region29: #{tpu_custom_call.1} parent=11 // pred_check
        %p284 = pneg %p147
      $region30: #{tpu_custom_call.1} parent=11 // pred_check_branch
        %286 = sbr.rel (%p284) target = $region32
      $region31: #{tpu_custom_call.1} parent=11 // pred_region
        _
      $region32: #{tpu_custom_call.1} parent=11 // pred_fallthru
        _
      // Predicated region
      $region33: #{tpu_custom_call.1} parent=11 // pred_check
        %p287 = pneg %p168
      $region34: #{tpu_custom_call.1} parent=11 // pred_check_branch
        %289 = sbr.rel (%p287) target = $region36
      $region35: #{tpu_custom_call.1} parent=11 // pred_region
        _
      $region36: #{tpu_custom_call.1} parent=11 // pred_fallthru
        _
      // Predicated region
      $region37: #{tpu_custom_call.1} parent=11 // pred_check
        %p290 = pneg %p189
      $region38: #{tpu_custom_call.1} parent=11 // pred_check_branch
        %292 = sbr.rel (%p290) target = $region40
      $region39: #{tpu_custom_call.1} parent=11 // pred_region
        _
      $region40: #{tpu_custom_call.1} parent=11 // pred_fallthru
        _
      // Predicated region
      $region41: #{tpu_custom_call.1} parent=11 // pred_check
        %p293 = pneg %p210
      $region42: #{tpu_custom_call.1} parent=11 // pred_check_branch
        %295 = sbr.rel (%p293) target = $region44
      $region43: #{tpu_custom_call.1} parent=11 // pred_region
        _
      $region44: #{tpu_custom_call.1} parent=11 // pred_fallthru
        _
      // Predicated region
      $region45: #{tpu_custom_call.1} parent=11 // pred_check
        %p296 = pneg %p231
      $region46: #{tpu_custom_call.1} parent=11 // pred_check_branch
        %298 = sbr.rel (%p296) target = $region48
      $region47: #{tpu_custom_call.1} parent=11 // pred_region
        _
      $region48: #{tpu_custom_call.1} parent=11 // pred_fallthru
        _
    $region12: #{tpu_custom_call.1} parent=5 // pred_fallthru
      _
    %p299 = scmp.lt.s32.totalorder %s16, 2
    // Predicated region
    $region49: #{tpu_custom_call.1} parent=5 // pred_check
      %p300 = pneg %p299
    $region50: #{tpu_custom_call.1} parent=5 // pred_check_branch
      %302 = sbr.rel (%p300) target = $region52
    $region51: #{tpu_custom_call.1} parent=5 // pred_region
      // Predicated region
      $region53: #{tpu_custom_call.1} parent=51 // pred_check
        %p303 = pneg %p36
      $region54: #{tpu_custom_call.1} parent=51 // pred_check_branch
        %305 = sbr.rel (%p303) target = $region56
      $region55: #{tpu_custom_call.1} parent=51 // pred_region
        %p306 = scmp.lt.s32.totalorder %s16, 1
        %s307 = scalar_select %p306, %s16, 1
        %s308 = smul.addr %s307, 36
        %s309 = smul.addr %s308, 4
        %s310 = scalar_lea.vmem %s0, %s309
      $region56: #{tpu_custom_call.1} parent=51 // pred_fallthru
        _
    $region52: #{tpu_custom_call.1} parent=5 // pred_fallthru
      _
    %p311 = scmp.le.s32.totalorder 1, %s16
    %p312 = scmp.lt.s32.totalorder %s16, 3
    %p313 = pnand %p311, %p312
    %p314 = pneg %p313
    // Predicated region
    $region57: #{tpu_custom_call.1} parent=5 // pred_check
      _
    $region58: #{tpu_custom_call.1} parent=5 // pred_check_branch
      %316 = sbr.rel (%p313) target = $region60
    $region59: #{tpu_custom_call.1} parent=5 // pred_region
      %s317 = ssub.s32 %s16, 1
      %p318 = scmp.lt.s32.totalorder %s21, 1
      %s319 = scalar_select %p318, %s21, 1
      %s320 = smul.addr %s319, 36
      %s321 = smul.addr %s320, 4
      %s322 = scalar_lea.vmem %s0, %s321
      %p323 = pneg %p42
      %p324 = pneg %p39
      %p325 = pneg %p63
      %p326 = pneg %p60
      %p327 = pneg %p84
      %p328 = pneg %p81
      %p329 = pneg %p105
      %p330 = pneg %p102
      %p331 = pneg %p126
      %p332 = pneg %p123
      %p333 = pneg %p147
      %p334 = pneg %p144
      %p335 = pneg %p168
      %p336 = pneg %p165
      %p337 = pneg %p189
      %p338 = pneg %p186
      %p339 = pneg %p210
      %p340 = pneg %p207
      %p341 = pneg %p231
      %p342 = pneg %p228
      %p343 = pneg %p257
      %p344 = pneg %p254
      %p345 = scmp.lt.s32.totalorder %s21, 1
      %s346 = scalar_select %p345, %s21, 1
      %s347 = smul.addr %s346, 8
      %s348 = smul.addr %s347, 8
      %s349 = scalar_lea.vmem %s10, %s348
      %p350 = scmp.lt.s32.totalorder %s21, 1
      %s351 = scalar_select %p350, %s21, 1
      %s352 = smul.addr %s351, 36
      %s353 = smul.addr %s352, 4
      %s354 = scalar_lea.vmem %s0, %s353
      %p355 = scmp.lt.s32.totalorder %s21, 1
      %s356 = scalar_select %p355, %s21, 1
      %s357 = smul.addr %s356, 8
      %s358 = smul.addr %s357, 8
      %s359 = scalar_lea.vmem %s10, %s358
      %v361 = vld [vmem:[%s354] sm:$0xf]
      %v362 = vld [vmem:[%s354 + $0x10] sm:$0xf]
      %v363 = vld [vmem:[%s354 + $0x20] sm:$0xf]
      %v364 = vld [vmem:[%s354 + $0x30] sm:$0xf]
      %v365 = vld [vmem:[%s354 + $0x40] sm:$0xf]
      %v366 = vld [vmem:[%s354 + $0x50] sm:$0xf]
      %v367 = vld [vmem:[%s354 + $0x60] sm:$0xf]
      %v368 = vld [vmem:[%s354 + $0x70] sm:$0xf]
      %v369 = vld [vmem:[%s354 + $0x4] sm:$0x1]
      %v370 = vld [vmem:[%s354 + $0x14] sm:$0x1]
      %v371 = vld [vmem:[%s354 + $0x24] sm:$0x1]
      %v372 = vld [vmem:[%s354 + $0x34] sm:$0x1]
      %v373 = vld [vmem:[%s354 + $0x44] sm:$0x1]
      %v374 = vld [vmem:[%s354 + $0x54] sm:$0x1]
      %v375 = vld [vmem:[%s354 + $0x64] sm:$0x1]
      %v376 = vld [vmem:[%s354 + $0x74] sm:$0x1]
      %v393 = vunpack.c.l.b16 %v361
      %v394 = vunpack.c.l.b16 %v369
      %v395 = vunpack.c.l.b16 %v362
      %v396 = vunpack.c.l.b16 %v370
      %v397 = vunpack.c.l.b16 %v363
      %v398 = vunpack.c.l.b16 %v371
      %v399 = vunpack.c.l.b16 %v364
      %v400 = vunpack.c.l.b16 %v372
      %v401 = vunpack.c.l.b16 %v365
      %v402 = vunpack.c.l.b16 %v373
      %v403 = vunpack.c.l.b16 %v366
      %v404 = vunpack.c.l.b16 %v374
      %v405 = vunpack.c.l.b16 %v367
      %v406 = vunpack.c.l.b16 %v375
      %v407 = vunpack.c.l.b16 %v368
      %v408 = vunpack.c.l.b16 %v376
      %v409 = vpack.c.b16 %v394, %v393
      %v410 = vpack.c.b16 %v396, %v395
      %v411 = vpack.c.b16 %v398, %v397
      %v412 = vpack.c.b16 %v400, %v399
      %v413 = vpack.c.b16 %v402, %v401
      %v414 = vpack.c.b16 %v404, %v403
      %v415 = vpack.c.b16 %v406, %v405
      %v416 = vpack.c.b16 %v408, %v407
      %v418 = vshrl.u32 %v409, 16
      %v420 = vshll.u32 %v409, 16
      %v422 = vrot.slane %v420, 1
      %v423 = vor.u32 %v418, %v422
      %v425 = vshrl.u32 %v410, 16
      %v427 = vshll.u32 %v410, 16
      %v429 = vrot.slane %v427, 1
      %v430 = vor.u32 %v425, %v429
      %v432 = vshrl.u32 %v411, 16
      %v434 = vshll.u32 %v411, 16
      %v436 = vrot.slane %v434, 1
      %v437 = vor.u32 %v432, %v436
      %v439 = vshrl.u32 %v412, 16
      %v441 = vshll.u32 %v412, 16
      %v443 = vrot.slane %v441, 1
      %v444 = vor.u32 %v439, %v443
      %v446 = vshrl.u32 %v413, 16
      %v448 = vshll.u32 %v413, 16
      %v450 = vrot.slane %v448, 1
      %v451 = vor.u32 %v446, %v450
      %v453 = vshrl.u32 %v414, 16
      %v455 = vshll.u32 %v414, 16
      %v457 = vrot.slane %v455, 1
      %v458 = vor.u32 %v453, %v457
      %v460 = vshrl.u32 %v415, 16
      %v462 = vshll.u32 %v415, 16
      %v464 = vrot.slane %v462, 1
      %v465 = vor.u32 %v460, %v464
      %v467 = vshrl.u32 %v416, 16
      %v469 = vshll.u32 %v416, 16
      %v471 = vrot.slane %v469, 1
      %v472 = vor.u32 %v467, %v471
      %473 = vrot.lane.b32.xlu0 %v423, 8
      %v474 = vpop.permute.xlu0 %473
      %475 = vrot.lane.b32.xlu0 %v430, 8
      %v476 = vpop.permute.xlu0 %475
      %477 = vrot.lane.b32.xlu0 %v437, 8
      %v478 = vpop.permute.xlu0 %477
      %479 = vrot.lane.b32.xlu0 %v444, 8
      %v480 = vpop.permute.xlu0 %479
      %481 = vrot.lane.b32.xlu0 %v451, 8
      %v482 = vpop.permute.xlu0 %481
      %483 = vrot.lane.b32.xlu0 %v458, 8
      %v484 = vpop.permute.xlu0 %483
      %485 = vrot.lane.b32.xlu0 %v465, 8
      %v486 = vpop.permute.xlu0 %485
      %487 = vrot.lane.b32.xlu0 %v472, 8
      %v488 = vpop.permute.xlu0 %487
      %vm489 = vcmask 64512
      %v492 = vsel %vm489, %v361, %v474
      %v495 = vsel %vm489, %v362, %v476
      %v498 = vsel %vm489, %v363, %v478
      %v501 = vsel %vm489, %v364, %v480
      %v504 = vsel %vm489, %v365, %v482
      %v507 = vsel %vm489, %v366, %v484
      %v510 = vsel %vm489, %v367, %v486
      %v513 = vsel %vm489, %v368, %v488
      %v514 = vld [vmem:[%s1] sm:$0xf]
      %v515 = vld [vmem:[%s1 + $0x4] sm:$0x3]
      %v524 = vunpack.c.l.b16 %v492
      %v525 = vunpack.c.l.b16 %v495
      %v526 = vunpack.c.l.b16 %v498
      %v527 = vunpack.c.l.b16 %v501
      %v528 = vunpack.c.l.b16 %v504
      %v529 = vunpack.c.l.b16 %v507
      %v530 = vunpack.c.l.b16 %v510
      %v531 = vunpack.c.l.b16 %v513
      %v532 = vpack.c.b16 %v525, %v524
      %v533 = vpack.c.b16 %v527, %v526
      %v534 = vpack.c.b16 %v529, %v528
      %v535 = vpack.c.b16 %v531, %v530
      %v538 = vunpack.c.l.b16 %v514
      %v539 = vunpack.c.l.b16 %v515
      %v540 = vpack.c.b16 %v539, %v538
      %vm541 = vcmask 97280
      %v543 = vsel %vm541, %v532, 0
      %v546 = vsel %vm541, %v533, 0
      %v549 = vsel %vm541, %v534, 0
      %v552 = vsel %vm541, %v535, 0
      %vm554 = vcmask 1045504
      %v556 = vsel %vm554, %v540, 0
      %558 = vmatprep.subr.bf16.mxu0 0
      %559 = vmatpush1.bf16.msra.mxu0 0
      %560 = vmatprep.subr.bf16.mxu0 0
      %561 = vmatpush1.bf16.msra.mxu0 0
      %562 = vmatprep.subr.bf16.mxu0 0
      %563 = vmatpush1.bf16.msra.mxu0 0
      %564 = vmatprep.subr.bf16.mxu0 0
      %565 = vmatpush1.bf16.msra.mxu0 0
      %566 = vmatprep.subr.bf16.mxu0 0
      %567 = vmatpush1.bf16.msra.mxu0 0
      %568 = vmatprep.subr.bf16.mxu0 0
      %569 = vmatpush1.bf16.msra.mxu0 0
      %570 = vmatprep.subr.bf16.mxu0 0
      %571 = vmatpush1.bf16.msra.mxu0 0
      %572 = vmatprep.subr.bf16.mxu0 0
      %573 = vmatpush1.bf16.msra.mxu0 %v556
      %574 = vmatprep.subr.bf16.mxu0 0
      %575 = vmatpush2.bf16.msra.mxu0 0
      %576 = vmatprep.subr.bf16.mxu0 0
      %577 = vmatpush2.bf16.msra.mxu0 0
      %578 = vmatprep.subr.bf16.mxu0 0
      %579 = vmatpush2.bf16.msra.mxu0 0
      %580 = vmatprep.subr.bf16.mxu0 0
      %581 = vmatpush2.bf16.msra.mxu0 0
      %582 = vmatprep.subr.bf16.mxu0 0
      %583 = vmatpush2.bf16.msra.mxu0 0
      %584 = vmatprep.subr.bf16.mxu0 0
      %585 = vmatpush2.bf16.msra.mxu0 0
      %586 = vmatprep.subr.bf16.mxu0 0
      %587 = vmatpush2.bf16.msra.mxu0 0
      %588 = vmatprep.subr.bf16.mxu0 0
      %589 = vmatpush2.bf16.msra.mxu0 0
      %590 = vmatprep.mubr.bf16.mxu0 0
      %591 = vmatmul.mubr.bf16.gmra.mxu0 %v543
      %v592 = vpop.f32.mrf.mxu0
      %v593 = vadd.f32 0.0, %v592
      %v594 = vpop.f32.mrf.mxu0
      %v595 = vpop.f32.mrf.mxu0
      %v596 = vadd.f32 0.0, %v595
      %v597 = vpop.f32.mrf.mxu0
      %598 = vmatprep.mubr.bf16.mxu0 0
      %599 = vmatmul.mubr.bf16.gmra.mxu0 %v546
      %v600 = vpop.f32.mrf.mxu0
      %v601 = vadd.f32 0.0, %v600
      %v602 = vpop.f32.mrf.mxu0
      %v603 = vpop.f32.mrf.mxu0
      %v604 = vadd.f32 0.0, %v603
      %v605 = vpop.f32.mrf.mxu0
      %606 = vmatprep.mubr.bf16.mxu0 0
      %607 = vmatmul.mubr.bf16.gmra.mxu0 %v549
      %v608 = vpop.f32.mrf.mxu0
      %v609 = vadd.f32 0.0, %v608
      %v610 = vpop.f32.mrf.mxu0
      %v611 = vpop.f32.mrf.mxu0
      %v612 = vadd.f32 0.0, %v611
      %v613 = vpop.f32.mrf.mxu0
      %614 = vmatprep.mubr.bf16.mxu0 0
      %615 = vmatmul.mubr.bf16.gmra.mxu0 %v552
      %v616 = vpop.f32.mrf.mxu0
      %v617 = vadd.f32 0.0, %v616
      %v618 = vpop.f32.mrf.mxu0
      %v619 = vpop.f32.mrf.mxu0
      %v620 = vadd.f32 0.0, %v619
      %v621 = vpop.f32.mrf.mxu0
      %622 = vdwg.mxu0
      %623 = vst.msk [vmem:[#allocation3] sm:$0xff] %vm489, %v593
      %624 = vst.msk [vmem:[#allocation3 + $0x8] sm:$0xff] %vm489, %v596
      %625 = vst.msk [vmem:[#allocation3 + $0x10] sm:$0xff] %vm489, %v601
      %626 = vst.msk [vmem:[#allocation3 + $0x18] sm:$0xff] %vm489, %v604
      %627 = vst.msk [vmem:[#allocation3 + $0x20] sm:$0xff] %vm489, %v609
      %628 = vst.msk [vmem:[#allocation3 + $0x28] sm:$0xff] %vm489, %v612
      %629 = vst.msk [vmem:[#allocation3 + $0x30] sm:$0xff] %vm489, %v617
      %630 = vst.msk [vmem:[#allocation3 + $0x38] sm:$0xff] %vm489, %v620
      %s631 = scalar_lea.vmem %s354, 8
      %v632 = vld [vmem:[%s631] sm:$0xf]
      %v633 = vld [vmem:[%s631 + $0x10] sm:$0xf]
      %v634 = vld [vmem:[%s631 + $0x20] sm:$0xf]
      %v635 = vld [vmem:[%s631 + $0x30] sm:$0xf]
      %v636 = vld [vmem:[%s631 + $0x40] sm:$0xf]
      %v637 = vld [vmem:[%s631 + $0x50] sm:$0xf]
      %v638 = vld [vmem:[%s631 + $0x60] sm:$0xf]
      %v639 = vld [vmem:[%s631 + $0x70] sm:$0xf]
      %v640 = vld [vmem:[%s631 + $0x4] sm:$0x1]
      %v641 = vld [vmem:[%s631 + $0x14] sm:$0x1]
      %v642 = vld [vmem:[%s631 + $0x24] sm:$0x1]
      %v643 = vld [vmem:[%s631 + $0x34] sm:$0x1]
      %v644 = vld [vmem:[%s631 + $0x44] sm:$0x1]
      %v645 = vld [vmem:[%s631 + $0x54] sm:$0x1]
      %v646 = vld [vmem:[%s631 + $0x64] sm:$0x1]
      %v647 = vld [vmem:[%s631 + $0x74] sm:$0x1]
      %v664 = vunpack.c.l.b16 %v632
      %v665 = vunpack.c.l.b16 %v640
      %v666 = vunpack.c.l.b16 %v633
      %v667 = vunpack.c.l.b16 %v641
      %v668 = vunpack.c.l.b16 %v634
      %v669 = vunpack.c.l.b16 %v642
      %v670 = vunpack.c.l.b16 %v635
      %v671 = vunpack.c.l.b16 %v643
      %v672 = vunpack.c.l.b16 %v636
      %v673 = vunpack.c.l.b16 %v644
      %v674 = vunpack.c.l.b16 %v637
      %v675 = vunpack.c.l.b16 %v645
      %v676 = vunpack.c.l.b16 %v638
      %v677 = vunpack.c.l.b16 %v646
      %v678 = vunpack.c.l.b16 %v639
      %v679 = vunpack.c.l.b16 %v647
      %v680 = vpack.c.b16 %v665, %v664
      %v681 = vpack.c.b16 %v667, %v666
      %v682 = vpack.c.b16 %v669, %v668
      %v683 = vpack.c.b16 %v671, %v670
      %v684 = vpack.c.b16 %v673, %v672
      %v685 = vpack.c.b16 %v675, %v674
      %v686 = vpack.c.b16 %v677, %v676
      %v687 = vpack.c.b16 %v679, %v678
      %v689 = vshrl.u32 %v680, 16
      %v691 = vshll.u32 %v680, 16
      %v693 = vrot.slane %v691, 1
      %v694 = vor.u32 %v689, %v693
      %v696 = vshrl.u32 %v681, 16
      %v698 = vshll.u32 %v681, 16
      %v700 = vrot.slane %v698, 1
      %v701 = vor.u32 %v696, %v700
      %v703 = vshrl.u32 %v682, 16
      %v705 = vshll.u32 %v682, 16
      %v707 = vrot.slane %v705, 1
      %v708 = vor.u32 %v703, %v707
      %v710 = vshrl.u32 %v683, 16
      %v712 = vshll.u32 %v683, 16
      %v714 = vrot.slane %v712, 1
      %v715 = vor.u32 %v710, %v714
      %v717 = vshrl.u32 %v684, 16
      %v719 = vshll.u32 %v684, 16
      %v721 = vrot.slane %v719, 1
      %v722 = vor.u32 %v717, %v721
      %v724 = vshrl.u32 %v685, 16
      %v726 = vshll.u32 %v685, 16
      %v728 = vrot.slane %v726, 1
      %v729 = vor.u32 %v724, %v728
      %v731 = vshrl.u32 %v686, 16
      %v733 = vshll.u32 %v686, 16
      %v735 = vrot.slane %v733, 1
      %v736 = vor.u32 %v731, %v735
      %v738 = vshrl.u32 %v687, 16
      %v740 = vshll.u32 %v687, 16
      %v742 = vrot.slane %v740, 1
      %v743 = vor.u32 %v738, %v742
      %744 = vrot.lane.b32.xlu0 %v694, 8
      %v745 = vpop.permute.xlu0 %744
      %746 = vrot.lane.b32.xlu0 %v701, 8
      %v747 = vpop.permute.xlu0 %746
      %748 = vrot.lane.b32.xlu0 %v708, 8
      %v749 = vpop.permute.xlu0 %748
      %750 = vrot.lane.b32.xlu0 %v715, 8
      %v751 = vpop.permute.xlu0 %750
      %752 = vrot.lane.b32.xlu0 %v722, 8
      %v753 = vpop.permute.xlu0 %752
      %754 = vrot.lane.b32.xlu0 %v729, 8
      %v755 = vpop.permute.xlu0 %754
      %756 = vrot.lane.b32.xlu0 %v736, 8
      %v757 = vpop.permute.xlu0 %756
      %758 = vrot.lane.b32.xlu0 %v743, 8
      %v759 = vpop.permute.xlu0 %758
      %v762 = vsel %vm489, %v632, %v745
      %v765 = vsel %vm489, %v633, %v747
      %v768 = vsel %vm489, %v634, %v749
      %v771 = vsel %vm489, %v635, %v751
      %v774 = vsel %vm489, %v636, %v753
      %v777 = vsel %vm489, %v637, %v755
      %v780 = vsel %vm489, %v638, %v757
      %v783 = vsel %vm489, %v639, %v759
      %s784 = scalar_lea.vmem %s1, 8
      %v785 = vld [vmem:[%s784] sm:$0xf]
      %v786 = vld [vmem:[%s784 + $0x4] sm:$0x3]
      %v795 = vunpack.c.l.b16 %v762
      %v796 = vunpack.c.l.b16 %v765
      %v797 = vunpack.c.l.b16 %v768
      %v798 = vunpack.c.l.b16 %v771
      %v799 = vunpack.c.l.b16 %v774
      %v800 = vunpack.c.l.b16 %v777
      %v801 = vunpack.c.l.b16 %v780
      %v802 = vunpack.c.l.b16 %v783
      %v803 = vpack.c.b16 %v796, %v795
      %v804 = vpack.c.b16 %v798, %v797
      %v805 = vpack.c.b16 %v800, %v799
      %v806 = vpack.c.b16 %v802, %v801
      %v809 = vunpack.c.l.b16 %v785
      %v810 = vunpack.c.l.b16 %v786
      %v811 = vpack.c.b16 %v810, %v809
      %v813 = vsel %vm541, %v803, 0
      %v816 = vsel %vm541, %v804, 0
      %v819 = vsel %vm541, %v805, 0
      %v822 = vsel %vm541, %v806, 0
      %v825 = vsel %vm554, %v811, 0
      %827 = vmatprep.subr.bf16.mxu0 0
      %828 = vmatpush1.bf16.msra.mxu0 0
      %829 = vmatprep.subr.bf16.mxu0 0
      %830 = vmatpush1.bf16.msra.mxu0 0
      %831 = vmatprep.subr.bf16.mxu0 0
      %832 = vmatpush1.bf16.msra.mxu0 0
      %833 = vmatprep.subr.bf16.mxu0 0
      %834 = vmatpush1.bf16.msra.mxu0 0
      %835 = vmatprep.subr.bf16.mxu0 0
      %836 = vmatpush1.bf16.msra.mxu0 0
      %837 = vmatprep.subr.bf16.mxu0 0
      %838 = vmatpush1.bf16.msra.mxu0 0
      %839 = vmatprep.subr.bf16.mxu0 0
      %840 = vmatpush1.bf16.msra.mxu0 0
      %841 = vmatprep.subr.bf16.mxu0 0
      %842 = vmatpush1.bf16.msra.mxu0 %v825
      %843 = vmatprep.subr.bf16.mxu0 0
      %844 = vmatpush2.bf16.msra.mxu0 0
      %845 = vmatprep.subr.bf16.mxu0 0
      %846 = vmatpush2.bf16.msra.mxu0 0
      %847 = vmatprep.subr.bf16.mxu0 0
      %848 = vmatpush2.bf16.msra.mxu0 0
      %849 = vmatprep.subr.bf16.mxu0 0
      %850 = vmatpush2.bf16.msra.mxu0 0
      %851 = vmatprep.subr.bf16.mxu0 0
      %852 = vmatpush2.bf16.msra.mxu0 0
      %853 = vmatprep.subr.bf16.mxu0 0
      %854 = vmatpush2.bf16.msra.mxu0 0
      %855 = vmatprep.subr.bf16.mxu0 0
      %856 = vmatpush2.bf16.msra.mxu0 0
      %857 = vmatprep.subr.bf16.mxu0 0
      %858 = vmatpush2.bf16.msra.mxu0 0
      %859 = vmatprep.mubr.bf16.mxu0 0
      %860 = vmatmul.mubr.bf16.gmra.mxu0 %v813
      %v861 = vpop.f32.mrf.mxu0
      %v862 = vadd.f32 0.0, %v861
      %v863 = vpop.f32.mrf.mxu0
      %v864 = vpop.f32.mrf.mxu0
      %v865 = vadd.f32 0.0, %v864
      %v866 = vpop.f32.mrf.mxu0
      %867 = vmatprep.mubr.bf16.mxu0 0
      %868 = vmatmul.mubr.bf16.gmra.mxu0 %v816
      %v869 = vpop.f32.mrf.mxu0
      %v870 = vadd.f32 0.0, %v869
      %v871 = vpop.f32.mrf.mxu0
      %v872 = vpop.f32.mrf.mxu0
      %v873 = vadd.f32 0.0, %v872
      %v874 = vpop.f32.mrf.mxu0
      %875 = vmatprep.mubr.bf16.mxu0 0
      %876 = vmatmul.mubr.bf16.gmra.mxu0 %v819
      %v877 = vpop.f32.mrf.mxu0
      %v878 = vadd.f32 0.0, %v877
      %v879 = vpop.f32.mrf.mxu0
      %v880 = vpop.f32.mrf.mxu0
      %v881 = vadd.f32 0.0, %v880
      %v882 = vpop.f32.mrf.mxu0
      %883 = vmatprep.mubr.bf16.mxu0 0
      %884 = vmatmul.mubr.bf16.gmra.mxu0 %v822
      %v885 = vpop.f32.mrf.mxu0
      %v886 = vadd.f32 0.0, %v885
      %v887 = vpop.f32.mrf.mxu0
      %v888 = vpop.f32.mrf.mxu0
      %v889 = vadd.f32 0.0, %v888
      %v890 = vpop.f32.mrf.mxu0
      %891 = vdwg.mxu0
      %v892 = vld [vmem:[#allocation3] sm:$0xff]
      %v893 = vld [vmem:[#allocation3 + $0x8] sm:$0xff]
      %v894 = vld [vmem:[#allocation3 + $0x10] sm:$0xff]
      %v895 = vld [vmem:[#allocation3 + $0x18] sm:$0xff]
      %v896 = vld [vmem:[#allocation3 + $0x20] sm:$0xff]
      %v897 = vld [vmem:[#allocation3 + $0x28] sm:$0xff]
      %v898 = vld [vmem:[#allocation3 + $0x30] sm:$0xff]
      %v899 = vld [vmem:[#allocation3 + $0x38] sm:$0xff]
      %v900 = vadd.f32 %v892, %v862
      %v901 = vadd.f32 %v893, %v865
      %v902 = vadd.f32 %v894, %v870
      %v903 = vadd.f32 %v895, %v873
      %v904 = vadd.f32 %v896, %v878
      %v905 = vadd.f32 %v897, %v881
      %v906 = vadd.f32 %v898, %v886
      %v907 = vadd.f32 %v899, %v889
      %908 = vst.msk [vmem:[#allocation3] sm:$0xff] %vm489, %v900
      %909 = vst.msk [vmem:[#allocation3 + $0x8] sm:$0xff] %vm489, %v901
      %910 = vst.msk [vmem:[#allocation3 + $0x10] sm:$0xff] %vm489, %v902
      %911 = vst.msk [vmem:[#allocation3 + $0x18] sm:$0xff] %vm489, %v903
      %912 = vst.msk [vmem:[#allocation3 + $0x20] sm:$0xff] %vm489, %v904
      %913 = vst.msk [vmem:[#allocation3 + $0x28] sm:$0xff] %vm489, %v905
      %914 = vst.msk [vmem:[#allocation3 + $0x30] sm:$0xff] %vm489, %v906
      %915 = vst.msk [vmem:[#allocation3 + $0x38] sm:$0xff] %vm489, %v907
      %s916 = scalar_lea.vmem %s354, 16
      %v917 = vld [vmem:[%s916] sm:$0xf]
      %v918 = vld [vmem:[%s916 + $0x10] sm:$0xf]
      %v919 = vld [vmem:[%s916 + $0x20] sm:$0xf]
      %v920 = vld [vmem:[%s916 + $0x30] sm:$0xf]
      %v921 = vld [vmem:[%s916 + $0x40] sm:$0xf]
      %v922 = vld [vmem:[%s916 + $0x50] sm:$0xf]
      %v923 = vld [vmem:[%s916 + $0x60] sm:$0xf]
      %v924 = vld [vmem:[%s916 + $0x70] sm:$0xf]
      %v925 = vld [vmem:[%s916 + $0x4] sm:$0x1]
      %v926 = vld [vmem:[%s916 + $0x14] sm:$0x1]
      %v927 = vld [vmem:[%s916 + $0x24] sm:$0x1]
      %v928 = vld [vmem:[%s916 + $0x34] sm:$0x1]
      %v929 = vld [vmem:[%s916 + $0x44] sm:$0x1]
      %v930 = vld [vmem:[%s916 + $0x54] sm:$0x1]
      %v931 = vld [vmem:[%s916 + $0x64] sm:$0x1]
      %v932 = vld [vmem:[%s916 + $0x74] sm:$0x1]
      %v949 = vunpack.c.l.b16 %v917
      %v950 = vunpack.c.l.b16 %v925
      %v951 = vunpack.c.l.b16 %v918
      %v952 = vunpack.c.l.b16 %v926
      %v953 = vunpack.c.l.b16 %v919
      %v954 = vunpack.c.l.b16 %v927
      %v955 = vunpack.c.l.b16 %v920
      %v956 = vunpack.c.l.b16 %v928
      %v957 = vunpack.c.l.b16 %v921
      %v958 = vunpack.c.l.b16 %v929
      %v959 = vunpack.c.l.b16 %v922
      %v960 = vunpack.c.l.b16 %v930
      %v961 = vunpack.c.l.b16 %v923
      %v962 = vunpack.c.l.b16 %v931
      %v963 = vunpack.c.l.b16 %v924
      %v964 = vunpack.c.l.b16 %v932
      %v965 = vpack.c.b16 %v950, %v949
      %v966 = vpack.c.b16 %v952, %v951
      %v967 = vpack.c.b16 %v954, %v953
      %v968 = vpack.c.b16 %v956, %v955
      %v969 = vpack.c.b16 %v958, %v957
      %v970 = vpack.c.b16 %v960, %v959
      %v971 = vpack.c.b16 %v962, %v961
      %v972 = vpack.c.b16 %v964, %v963
      %v974 = vshrl.u32 %v965, 16
      %v976 = vshll.u32 %v965, 16
      %v978 = vrot.slane %v976, 1
      %v979 = vor.u32 %v974, %v978
      %v981 = vshrl.u32 %v966, 16
      %v983 = vshll.u32 %v966, 16
      %v985 = vrot.slane %v983, 1
      %v986 = vor.u32 %v981, %v985
      %v988 = vshrl.u32 %v967, 16
      %v990 = vshll.u32 %v967, 16
      %v992 = vrot.slane %v990, 1
      %v993 = vor.u32 %v988, %v992
      %v995 = vshrl.u32 %v968, 16
      %v997 = vshll.u32 %v968, 16
      %v999 = vrot.slane %v997, 1
      %v1000 = vor.u32 %v995, %v999
      %v1002 = vshrl.u32 %v969, 16
      %v1004 = vshll.u32 %v969, 16
      %v1006 = vrot.slane %v1004, 1
      %v1007 = vor.u32 %v1002, %v1006
      %v1009 = vshrl.u32 %v970, 16
      %v1011 = vshll.u32 %v970, 16
      %v1013 = vrot.slane %v1011, 1
      %v1014 = vor.u32 %v1009, %v1013
      %v1016 = vshrl.u32 %v971, 16
      %v1018 = vshll.u32 %v971, 16
      %v1020 = vrot.slane %v1018, 1
      %v1021 = vor.u32 %v1016, %v1020
      %v1023 = vshrl.u32 %v972, 16
      %v1025 = vshll.u32 %v972, 16
      %v1027 = vrot.slane %v1025, 1
      %v1028 = vor.u32 %v1023, %v1027
      %1029 = vrot.lane.b32.xlu0 %v979, 8
      %v1030 = vpop.permute.xlu0 %1029
      %1031 = vrot.lane.b32.xlu0 %v986, 8
      %v1032 = vpop.permute.xlu0 %1031
      %1033 = vrot.lane.b32.xlu0 %v993, 8
      %v1034 = vpop.permute.xlu0 %1033
      %1035 = vrot.lane.b32.xlu0 %v1000, 8
      %v1036 = vpop.permute.xlu0 %1035
      %1037 = vrot.lane.b32.xlu0 %v1007, 8
      %v1038 = vpop.permute.xlu0 %1037
      %1039 = vrot.lane.b32.xlu0 %v1014, 8
      %v1040 = vpop.permute.xlu0 %1039
      %1041 = vrot.lane.b32.xlu0 %v1021, 8
      %v1042 = vpop.permute.xlu0 %1041
      %1043 = vrot.lane.b32.xlu0 %v1028, 8
      %v1044 = vpop.permute.xlu0 %1043
      %v1047 = vsel %vm489, %v917, %v1030
      %v1050 = vsel %vm489, %v918, %v1032
      %v1053 = vsel %vm489, %v919, %v1034
      %v1056 = vsel %vm489, %v920, %v1036
      %v1059 = vsel %vm489, %v921, %v1038
      %v1062 = vsel %vm489, %v922, %v1040
      %v1065 = vsel %vm489, %v923, %v1042
      %v1068 = vsel %vm489, %v924, %v1044
      %s1069 = scalar_lea.vmem %s1, 16
      %v1070 = vld [vmem:[%s1069] sm:$0xf]
      %v1071 = vld [vmem:[%s1069 + $0x4] sm:$0x3]
      %v1080 = vunpack.c.l.b16 %v1047
      %v1081 = vunpack.c.l.b16 %v1050
      %v1082 = vunpack.c.l.b16 %v1053
      %v1083 = vunpack.c.l.b16 %v1056
      %v1084 = vunpack.c.l.b16 %v1059
      %v1085 = vunpack.c.l.b16 %v1062
      %v1086 = vunpack.c.l.b16 %v1065
      %v1087 = vunpack.c.l.b16 %v1068
      %v1088 = vpack.c.b16 %v1081, %v1080
      %v1089 = vpack.c.b16 %v1083, %v1082
      %v1090 = vpack.c.b16 %v1085, %v1084
      %v1091 = vpack.c.b16 %v1087, %v1086
      %v1094 = vunpack.c.l.b16 %v1070
      %v1095 = vunpack.c.l.b16 %v1071
      %v1096 = vpack.c.b16 %v1095, %v1094
      %v1098 = vsel %vm541, %v1088, 0
      %v1101 = vsel %vm541, %v1089, 0
      %v1104 = vsel %vm541, %v1090, 0
      %v1107 = vsel %vm541, %v1091, 0
      %v1110 = vsel %vm554, %v1096, 0
      %1112 = vmatprep.subr.bf16.mxu0 0
      %1113 = vmatpush1.bf16.msra.mxu0 0
      %1114 = vmatprep.subr.bf16.mxu0 0
      %1115 = vmatpush1.bf16.msra.mxu0 0
      %1116 = vmatprep.subr.bf16.mxu0 0
      %1117 = vmatpush1.bf16.msra.mxu0 0
      %1118 = vmatprep.subr.bf16.mxu0 0
      %1119 = vmatpush1.bf16.msra.mxu0 0
      %1120 = vmatprep.subr.bf16.mxu0 0
      %1121 = vmatpush1.bf16.msra.mxu0 0
      %1122 = vmatprep.subr.bf16.mxu0 0
      %1123 = vmatpush1.bf16.msra.mxu0 0
      %1124 = vmatprep.subr.bf16.mxu0 0
      %1125 = vmatpush1.bf16.msra.mxu0 0
      %1126 = vmatprep.subr.bf16.mxu0 0
      %1127 = vmatpush1.bf16.msra.mxu0 %v1110
      %1128 = vmatprep.subr.bf16.mxu0 0
      %1129 = vmatpush2.bf16.msra.mxu0 0
      %1130 = vmatprep.subr.bf16.mxu0 0
      %1131 = vmatpush2.bf16.msra.mxu0 0
      %1132 = vmatprep.subr.bf16.mxu0 0
      %1133 = vmatpush2.bf16.msra.mxu0 0
      %1134 = vmatprep.subr.bf16.mxu0 0
      %1135 = vmatpush2.bf16.msra.mxu0 0
      %1136 = vmatprep.subr.bf16.mxu0 0
      %1137 = vmatpush2.bf16.msra.mxu0 0
      %1138 = vmatprep.subr.bf16.mxu0 0
      %1139 = vmatpush2.bf16.msra.mxu0 0
      %1140 = vmatprep.subr.bf16.mxu0 0
      %1141 = vmatpush2.bf16.msra.mxu0 0
      %1142 = vmatprep.subr.bf16.mxu0 0
      %1143 = vmatpush2.bf16.msra.mxu0 0
      %1144 = vmatprep.mubr.bf16.mxu0 0
      %1145 = vmatmul.mubr.bf16.gmra.mxu0 %v1098
      %v1146 = vpop.f32.mrf.mxu0
      %v1147 = vadd.f32 0.0, %v1146
      %v1148 = vpop.f32.mrf.mxu0
      %v1149 = vpop.f32.mrf.mxu0
      %v1150 = vadd.f32 0.0, %v1149
      %v1151 = vpop.f32.mrf.mxu0
      %1152 = vmatprep.mubr.bf16.mxu0 0
      %1153 = vmatmul.mubr.bf16.gmra.mxu0 %v1101
      %v1154 = vpop.f32.mrf.mxu0
      %v1155 = vadd.f32 0.0, %v1154
      %v1156 = vpop.f32.mrf.mxu0
      %v1157 = vpop.f32.mrf.mxu0
      %v1158 = vadd.f32 0.0, %v1157
      %v1159 = vpop.f32.mrf.mxu0
      %1160 = vmatprep.mubr.bf16.mxu0 0
      %1161 = vmatmul.mubr.bf16.gmra.mxu0 %v1104
      %v1162 = vpop.f32.mrf.mxu0
      %v1163 = vadd.f32 0.0, %v1162
      %v1164 = vpop.f32.mrf.mxu0
      %v1165 = vpop.f32.mrf.mxu0
      %v1166 = vadd.f32 0.0, %v1165
      %v1167 = vpop.f32.mrf.mxu0
      %1168 = vmatprep.mubr.bf16.mxu0 0
      %1169 = vmatmul.mubr.bf16.gmra.mxu0 %v1107
      %v1170 = vpop.f32.mrf.mxu0
      %v1171 = vadd.f32 0.0, %v1170
      %v1172 = vpop.f32.mrf.mxu0
      %v1173 = vpop.f32.mrf.mxu0
      %v1174 = vadd.f32 0.0, %v1173
      %v1175 = vpop.f32.mrf.mxu0
      %1176 = vdwg.mxu0
      %v1177 = vld [vmem:[#allocation3] sm:$0xff]
      %v1178 = vld [vmem:[#allocation3 + $0x8] sm:$0xff]
      %v1179 = vld [vmem:[#allocation3 + $0x10] sm:$0xff]
      %v1180 = vld [vmem:[#allocation3 + $0x18] sm:$0xff]
      %v1181 = vld [vmem:[#allocation3 + $0x20] sm:$0xff]
      %v1182 = vld [vmem:[#allocation3 + $0x28] sm:$0xff]
      %v1183 = vld [vmem:[#allocation3 + $0x30] sm:$0xff]
      %v1184 = vld [vmem:[#allocation3 + $0x38] sm:$0xff]
      %v1185 = vadd.f32 %v1177, %v1147
      %v1186 = vadd.f32 %v1178, %v1150
      %v1187 = vadd.f32 %v1179, %v1155
      %v1188 = vadd.f32 %v1180, %v1158
      %v1189 = vadd.f32 %v1181, %v1163
      %v1190 = vadd.f32 %v1182, %v1166
      %v1191 = vadd.f32 %v1183, %v1171
      %v1192 = vadd.f32 %v1184, %v1174
      %1193 = vst.msk [vmem:[#allocation3] sm:$0xff] %vm489, %v1185
      %1194 = vst.msk [vmem:[#allocation3 + $0x8] sm:$0xff] %vm489, %v1186
      %1195 = vst.msk [vmem:[#allocation3 + $0x10] sm:$0xff] %vm489, %v1187
      %1196 = vst.msk [vmem:[#allocation3 + $0x18] sm:$0xff] %vm489, %v1188
      %1197 = vst.msk [vmem:[#allocation3 + $0x20] sm:$0xff] %vm489, %v1189
      %1198 = vst.msk [vmem:[#allocation3 + $0x28] sm:$0xff] %vm489, %v1190
      %1199 = vst.msk [vmem:[#allocation3 + $0x30] sm:$0xff] %vm489, %v1191
      %1200 = vst.msk [vmem:[#allocation3 + $0x38] sm:$0xff] %vm489, %v1192
      %v1201 = vld [vmem:[#allocation3] sm:$0xff]
      %v1202 = vld [vmem:[#allocation3 + $0x8] sm:$0xff]
      %v1203 = vld [vmem:[#allocation3 + $0x10] sm:$0xff]
      %v1204 = vld [vmem:[#allocation3 + $0x18] sm:$0xff]
      %v1205 = vld [vmem:[#allocation3 + $0x20] sm:$0xff]
      %v1206 = vld [vmem:[#allocation3 + $0x28] sm:$0xff]
      %v1207 = vld [vmem:[#allocation3 + $0x30] sm:$0xff]
      %v1208 = vld [vmem:[#allocation3 + $0x38] sm:$0xff]
      %v1209 = vld [vmem:[%s2] sm:$0x1]
      %v1211 = vlaneseq
      %v1212 = vshrl.u32 %v1211, 7
      %v1213 = vsub.s32 0, %v1212
      %v1214 = vrot.slane %v1209, %v1213
      %v1216 = vmul.f32 %v1201, %v1214
      %v1217 = vmul.f32 %v1202, %v1214
      %v1218 = vmul.f32 %v1203, %v1214
      %v1219 = vmul.f32 %v1204, %v1214
      %v1220 = vmul.f32 %v1205, %v1214
      %v1221 = vmul.f32 %v1206, %v1214
      %v1222 = vmul.f32 %v1207, %v1214
      %v1223 = vmul.f32 %v1208, %v1214
      %v1224 = vld [vmem:[%s3] sm:$0x1]
      %v1226 = vlaneseq
      %v1227 = vshrl.u32 %v1226, 7
      %v1228 = vsub.s32 0, %v1227
      %v1229 = vrot.slane %v1224, %v1228
      %v1231 = vadd.f32 %v1216, %v1229
      %v1232 = vadd.f32 %v1217, %v1229
      %v1233 = vadd.f32 %v1218, %v1229
      %v1234 = vadd.f32 %v1219, %v1229
      %v1235 = vadd.f32 %v1220, %v1229
      %v1236 = vadd.f32 %v1221, %v1229
      %v1237 = vadd.f32 %v1222, %v1229
      %v1238 = vadd.f32 %v1223, %v1229
      %v1239 = vmax.f32 %v1231, 0.0
      %v1240 = vmax.f32 %v1232, 0.0
      %v1241 = vmax.f32 %v1233, 0.0
      %v1242 = vmax.f32 %v1234, 0.0
      %v1243 = vmax.f32 %v1235, 0.0
      %v1244 = vmax.f32 %v1236, 0.0
      %v1245 = vmax.f32 %v1237, 0.0
      %v1246 = vmax.f32 %v1238, 0.0
      %vm1247 = vcmask 60416
      %1248 = vst.msk [vmem:[#allocation2] sm:$0xf] %vm1247, 0
      %vm1249 = vcmask 57344
      %1250 = vst.msk [vmem:[#allocation2 + $0x4] sm:$0x1] %vm1249, 0
      %s1251 = scalar_lea.vmem [#allocation2], 72
      %1252 = vst.msk [vmem:[%s1251] sm:$0xf] %vm1247, 0
      %1253 = vst.msk [vmem:[%s1251 + $0x4] sm:$0x1] %vm1249, 0
      %v1254 = vpack.c.bf16 %v1239, %v1239
      %v1255 = vpack.c.bf16 %v1240, %v1240
      %v1256 = vpack.c.bf16 %v1241, %v1241
      %v1257 = vpack.c.bf16 %v1242, %v1242
      %v1258 = vpack.c.bf16 %v1243, %v1243
      %v1259 = vpack.c.bf16 %v1244, %v1244
      %v1260 = vpack.c.bf16 %v1245, %v1245
      %v1261 = vpack.c.bf16 %v1246, %v1246
      %v1263 = vshrl.u32 %v1254, 16
      %v1265 = vrot.slane %v1263, 7
      %v1266 = vshll.u32 %v1254, 16
      %v1268 = vor.u32 %v1265, %v1266
      %v1270 = vshrl.u32 %v1255, 16
      %v1272 = vrot.slane %v1270, 7
      %v1273 = vshll.u32 %v1255, 16
      %v1275 = vor.u32 %v1272, %v1273
      %v1277 = vshrl.u32 %v1256, 16
      %v1279 = vrot.slane %v1277, 7
      %v1280 = vshll.u32 %v1256, 16
      %v1282 = vor.u32 %v1279, %v1280
      %v1284 = vshrl.u32 %v1257, 16
      %v1286 = vrot.slane %v1284, 7
      %v1287 = vshll.u32 %v1257, 16
      %v1289 = vor.u32 %v1286, %v1287
      %v1291 = vshrl.u32 %v1258, 16
      %v1293 = vrot.slane %v1291, 7
      %v1294 = vshll.u32 %v1258, 16
      %v1296 = vor.u32 %v1293, %v1294
      %v1298 = vshrl.u32 %v1259, 16
      %v1300 = vrot.slane %v1298, 7
      %v1301 = vshll.u32 %v1259, 16
      %v1303 = vor.u32 %v1300, %v1301
      %v1305 = vshrl.u32 %v1260, 16
      %v1307 = vrot.slane %v1305, 7
      %v1308 = vshll.u32 %v1260, 16
      %v1310 = vor.u32 %v1307, %v1308
      %v1312 = vshrl.u32 %v1261, 16
      %v1314 = vrot.slane %v1312, 7
      %v1315 = vshll.u32 %v1261, 16
      %v1317 = vor.u32 %v1314, %v1315
      %vm1326 = vcmask 1040384
      %vm1327 = vsmask.f32 256
      %vm1328 = vmand %vm1326, %vm1327
      %v1329 = vsel %vm1328, 0, %v1268
      %v1330 = vsel %vm1328, 0, %v1275
      %v1331 = vsel %vm1328, 0, %v1282
      %v1332 = vsel %vm1328, 0, %v1289
      %v1333 = vsel %vm1328, 0, %v1296
      %v1334 = vsel %vm1328, 0, %v1303
      %v1335 = vsel %vm1328, 0, %v1310
      %v1336 = vsel %vm1328, 0, %v1317
      %vm1337 = vcmask 1044480
      %vm1338 = vsmask.f32 4352
      %vm1339 = vmand %vm1337, %vm1338
      %v1340 = vsel %vm1339, %v1329, 0
      %v1341 = vsel %vm1339, %v1330, 0
      %v1342 = vsel %vm1339, %v1331, 0
      %v1343 = vsel %vm1339, %v1332, 0
      %v1344 = vsel %vm1339, %v1333, 0
      %v1345 = vsel %vm1339, %v1334, 0
      %v1346 = vsel %vm1339, %v1335, 0
      %v1347 = vsel %vm1339, %v1336, 0
      %v1356 = vunpack.c.l.b16 %v1340
      %v1357 = vunpack.c.h.b16 %v1340
      %v1358 = vunpack.c.l.b16 %v1341
      %v1359 = vunpack.c.h.b16 %v1341
      %v1360 = vunpack.c.l.b16 %v1342
      %v1361 = vunpack.c.h.b16 %v1342
      %v1362 = vunpack.c.l.b16 %v1343
      %v1363 = vunpack.c.h.b16 %v1343
      %v1364 = vunpack.c.l.b16 %v1344
      %v1365 = vunpack.c.h.b16 %v1344
      %v1366 = vunpack.c.l.b16 %v1345
      %v1367 = vunpack.c.h.b16 %v1345
      %v1368 = vunpack.c.l.b16 %v1346
      %v1369 = vunpack.c.h.b16 %v1346
      %v1370 = vunpack.c.l.b16 %v1347
      %v1371 = vunpack.c.h.b16 %v1347
      %v1372 = vpack.c.b16 %v1356, %v1356
      %v1373 = vpack.c.b16 %v1357, %v1357
      %v1374 = vpack.c.b16 %v1358, %v1358
      %v1375 = vpack.c.b16 %v1359, %v1359
      %v1376 = vpack.c.b16 %v1360, %v1360
      %v1377 = vpack.c.b16 %v1361, %v1361
      %v1378 = vpack.c.b16 %v1362, %v1362
      %v1379 = vpack.c.b16 %v1363, %v1363
      %v1380 = vpack.c.b16 %v1364, %v1364
      %v1381 = vpack.c.b16 %v1365, %v1365
      %v1382 = vpack.c.b16 %v1366, %v1366
      %v1383 = vpack.c.b16 %v1367, %v1367
      %v1384 = vpack.c.b16 %v1368, %v1368
      %v1385 = vpack.c.b16 %v1369, %v1369
      %v1386 = vpack.c.b16 %v1370, %v1370
      %v1387 = vpack.c.b16 %v1371, %v1371
      %s1404 = scalar_lea.vmem [#allocation2], 8
      %1405 = vst.msk [vmem:[%s1404] sm:$0xf] %vm1247, %v1372
      %1406 = vst.msk [vmem:[%s1404 + $0x4] sm:$0x1] %vm1249, %v1373
      %1407 = vst.msk [vmem:[%s1404 + $0x8] sm:$0xf] %vm1247, %v1374
      %1408 = vst.msk [vmem:[%s1404 + $0xc] sm:$0x1] %vm1249, %v1375
      %1409 = vst.msk [vmem:[%s1404 + $0x10] sm:$0xf] %vm1247, %v1376
      %1410 = vst.msk [vmem:[%s1404 + $0x14] sm:$0x1] %vm1249, %v1377
      %1411 = vst.msk [vmem:[%s1404 + $0x18] sm:$0xf] %vm1247, %v1378
      %1412 = vst.msk [vmem:[%s1404 + $0x1c] sm:$0x1] %vm1249, %v1379
      %1413 = vst.msk [vmem:[%s1404 + $0x20] sm:$0xf] %vm1247, %v1380
      %1414 = vst.msk [vmem:[%s1404 + $0x24] sm:$0x1] %vm1249, %v1381
      %1415 = vst.msk [vmem:[%s1404 + $0x28] sm:$0xf] %vm1247, %v1382
      %1416 = vst.msk [vmem:[%s1404 + $0x2c] sm:$0x1] %vm1249, %v1383
      %1417 = vst.msk [vmem:[%s1404 + $0x30] sm:$0xf] %vm1247, %v1384
      %1418 = vst.msk [vmem:[%s1404 + $0x34] sm:$0x1] %vm1249, %v1385
      %1419 = vst.msk [vmem:[%s1404 + $0x38] sm:$0xf] %vm1247, %v1386
      %1420 = vst.msk [vmem:[%s1404 + $0x3c] sm:$0x1] %vm1249, %v1387
      %v1421 = vld [vmem:[#allocation2] sm:$0xf]
      %v1422 = vld [vmem:[#allocation2 + $0x4] sm:$0x1]
      %v1423 = vld [vmem:[#allocation2 + $0x8] sm:$0xf]
      %v1424 = vld [vmem:[#allocation2 + $0xc] sm:$0x1]
      %v1425 = vld [vmem:[#allocation2 + $0x10] sm:$0xf]
      %v1426 = vld [vmem:[#allocation2 + $0x14] sm:$0x1]
      %v1427 = vld [vmem:[#allocation2 + $0x18] sm:$0xf]
      %v1428 = vld [vmem:[#allocation2 + $0x1c] sm:$0x1]
      %v1429 = vld [vmem:[#allocation2 + $0x20] sm:$0xf]
      %v1430 = vld [vmem:[#allocation2 + $0x24] sm:$0x1]
      %v1431 = vld [vmem:[#allocation2 + $0x28] sm:$0xf]
      %v1432 = vld [vmem:[#allocation2 + $0x2c] sm:$0x1]
      %v1433 = vld [vmem:[#allocation2 + $0x30] sm:$0xf]
      %v1434 = vld [vmem:[#allocation2 + $0x34] sm:$0x1]
      %v1435 = vld [vmem:[#allocation2 + $0x38] sm:$0xf]
      %v1436 = vld [vmem:[#allocation2 + $0x3c] sm:$0x1]
      %v1453 = vunpack.c.l.b16 %v1421
      %v1454 = vunpack.c.l.b16 %v1422
      %v1455 = vunpack.c.l.b16 %v1423
      %v1456 = vunpack.c.l.b16 %v1424
      %v1457 = vunpack.c.l.b16 %v1425
      %v1458 = vunpack.c.l.b16 %v1426
      %v1459 = vunpack.c.l.b16 %v1427
      %v1460 = vunpack.c.l.b16 %v1428
      %v1461 = vunpack.c.l.b16 %v1429
      %v1462 = vunpack.c.l.b16 %v1430
      %v1463 = vunpack.c.l.b16 %v1431
      %v1464 = vunpack.c.l.b16 %v1432
      %v1465 = vunpack.c.l.b16 %v1433
      %v1466 = vunpack.c.l.b16 %v1434
      %v1467 = vunpack.c.l.b16 %v1435
      %v1468 = vunpack.c.l.b16 %v1436
      %v1469 = vpack.c.b16 %v1454, %v1453
      %v1470 = vpack.c.b16 %v1456, %v1455
      %v1471 = vpack.c.b16 %v1458, %v1457
      %v1472 = vpack.c.b16 %v1460, %v1459
      %v1473 = vpack.c.b16 %v1462, %v1461
      %v1474 = vpack.c.b16 %v1464, %v1463
      %v1475 = vpack.c.b16 %v1466, %v1465
      %v1476 = vpack.c.b16 %v1468, %v1467
      %v1478 = vshrl.u32 %v1469, 16
      %v1480 = vshll.u32 %v1469, 16
      %v1482 = vrot.slane %v1480, 1
      %v1483 = vor.u32 %v1478, %v1482
      %v1485 = vshrl.u32 %v1470, 16
      %v1487 = vshll.u32 %v1470, 16
      %v1489 = vrot.slane %v1487, 1
      %v1490 = vor.u32 %v1485, %v1489
      %v1492 = vshrl.u32 %v1471, 16
      %v1494 = vshll.u32 %v1471, 16
      %v1496 = vrot.slane %v1494, 1
      %v1497 = vor.u32 %v1492, %v1496
      %v1499 = vshrl.u32 %v1472, 16
      %v1501 = vshll.u32 %v1472, 16
      %v1503 = vrot.slane %v1501, 1
      %v1504 = vor.u32 %v1499, %v1503
      %v1506 = vshrl.u32 %v1473, 16
      %v1508 = vshll.u32 %v1473, 16
      %v1510 = vrot.slane %v1508, 1
      %v1511 = vor.u32 %v1506, %v1510
      %v1513 = vshrl.u32 %v1474, 16
      %v1515 = vshll.u32 %v1474, 16
      %v1517 = vrot.slane %v1515, 1
      %v1518 = vor.u32 %v1513, %v1517
      %v1520 = vshrl.u32 %v1475, 16
      %v1522 = vshll.u32 %v1475, 16
      %v1524 = vrot.slane %v1522, 1
      %v1525 = vor.u32 %v1520, %v1524
      %v1527 = vshrl.u32 %v1476, 16
      %v1529 = vshll.u32 %v1476, 16
      %v1531 = vrot.slane %v1529, 1
      %v1532 = vor.u32 %v1527, %v1531
      %1533 = vrot.lane.b32.xlu0 %v1483, 8
      %v1534 = vpop.permute.xlu0 %1533
      %1535 = vrot.lane.b32.xlu0 %v1490, 8
      %v1536 = vpop.permute.xlu0 %1535
      %1537 = vrot.lane.b32.xlu0 %v1497, 8
      %v1538 = vpop.permute.xlu0 %1537
      %1539 = vrot.lane.b32.xlu0 %v1504, 8
      %v1540 = vpop.permute.xlu0 %1539
      %1541 = vrot.lane.b32.xlu0 %v1511, 8
      %v1542 = vpop.permute.xlu0 %1541
      %1543 = vrot.lane.b32.xlu0 %v1518, 8
      %v1544 = vpop.permute.xlu0 %1543
      %1545 = vrot.lane.b32.xlu0 %v1525, 8
      %v1546 = vpop.permute.xlu0 %1545
      %1547 = vrot.lane.b32.xlu0 %v1532, 8
      %v1548 = vpop.permute.xlu0 %1547
      %v1549 = vrot.slane %v1469, 1
      %v1550 = vrot.slane %v1470, 1
      %v1551 = vrot.slane %v1471, 1
      %v1552 = vrot.slane %v1472, 1
      %v1553 = vrot.slane %v1473, 1
      %v1554 = vrot.slane %v1474, 1
      %v1555 = vrot.slane %v1475, 1
      %v1556 = vrot.slane %v1476, 1
      %1557 = vrot.lane.b32.xlu0 %v1549, 16
      %v1558 = vpop.permute.xlu0 %1557
      %1559 = vrot.lane.b32.xlu0 %v1550, 16
      %v1560 = vpop.permute.xlu0 %1559
      %1561 = vrot.lane.b32.xlu0 %v1551, 16
      %v1562 = vpop.permute.xlu0 %1561
      %1563 = vrot.lane.b32.xlu0 %v1552, 16
      %v1564 = vpop.permute.xlu0 %1563
      %1565 = vrot.lane.b32.xlu0 %v1553, 16
      %v1566 = vpop.permute.xlu0 %1565
      %1567 = vrot.lane.b32.xlu0 %v1554, 16
      %v1568 = vpop.permute.xlu0 %1567
      %1569 = vrot.lane.b32.xlu0 %v1555, 16
      %v1570 = vpop.permute.xlu0 %1569
      %1571 = vrot.lane.b32.xlu0 %v1556, 16
      %v1572 = vpop.permute.xlu0 %1571
      %v1575 = vsel %vm489, %v1421, %v1534
      %v1578 = vsel %vm489, %v1423, %v1536
      %v1581 = vsel %vm489, %v1425, %v1538
      %v1584 = vsel %vm489, %v1427, %v1540
      %v1587 = vsel %vm489, %v1429, %v1542
      %v1590 = vsel %vm489, %v1431, %v1544
      %v1593 = vsel %vm489, %v1433, %v1546
      %v1596 = vsel %vm489, %v1435, %v1548
      %vm1597 = vcmask 130048
      %v1599 = vsel %vm1597, %v1575, %v1558
      %v1601 = vsel %vm1597, %v1578, %v1560
      %v1603 = vsel %vm1597, %v1581, %v1562
      %v1605 = vsel %vm1597, %v1584, %v1564
      %v1607 = vsel %vm1597, %v1587, %v1566
      %v1609 = vsel %vm1597, %v1590, %v1568
      %v1611 = vsel %vm1597, %v1593, %v1570
      %v1613 = vsel %vm1597, %v1596, %v1572
      %v1614 = vld [vmem:[%s4] sm:$0xf]
      %v1615 = vld [vmem:[%s4 + $0x4] sm:$0xf]
      %v1616 = vld [vmem:[%s4 + $0x8] sm:$0xf]
      %v1625 = vunpack.c.l.b16 %v1599
      %v1626 = vunpack.c.l.b16 %v1601
      %v1627 = vunpack.c.l.b16 %v1603
      %v1628 = vunpack.c.l.b16 %v1605
      %v1629 = vunpack.c.l.b16 %v1607
      %v1630 = vunpack.c.l.b16 %v1609
      %v1631 = vunpack.c.l.b16 %v1611
      %v1632 = vunpack.c.l.b16 %v1613
      %v1633 = vpack.c.b16 %v1626, %v1625
      %v1634 = vpack.c.b16 %v1628, %v1627
      %v1635 = vpack.c.b16 %v1630, %v1629
      %v1636 = vpack.c.b16 %v1632, %v1631
      %v1640 = vunpack.c.l.b16 %v1614
      %v1641 = vunpack.c.l.b16 %v1615
      %v1642 = vunpack.c.l.b16 %v1616
      %v1643 = vpack.c.b16 %v1641, %v1640
      %v1644 = vpack.c.b16 %v1642, %v1642
      %vm1646 = vcmask 195584
      %v1648 = vsel %vm1646, %v1633, 0
      %v1651 = vsel %vm1646, %v1634, 0
      %v1654 = vsel %vm1646, %v1635, 0
      %v1657 = vsel %vm1646, %v1636, 0
      %vm1659 = vcmask 1043456
      %v1661 = vsel %vm1659, %v1644, 0
      %1663 = vmatprep.subr.bf16.mxu0 0
      %1664 = vmatpush1.bf16.msra.mxu0 0
      %1665 = vmatprep.subr.bf16.mxu0 0
      %1666 = vmatpush1.bf16.msra.mxu0 0
      %1667 = vmatprep.subr.bf16.mxu0 0
      %1668 = vmatpush1.bf16.msra.mxu0 0
      %1669 = vmatprep.subr.bf16.mxu0 0
      %1670 = vmatpush1.bf16.msra.mxu0 0
      %1671 = vmatprep.subr.bf16.mxu0 0
      %1672 = vmatpush1.bf16.msra.mxu0 0
      %1673 = vmatprep.subr.bf16.mxu0 0
      %1674 = vmatpush1.bf16.msra.mxu0 0
      %1675 = vmatprep.subr.bf16.mxu0 0
      %1676 = vmatpush1.bf16.msra.mxu0 %v1661
      %1677 = vmatprep.subr.bf16.mxu0 0
      %1678 = vmatpush1.bf16.msra.mxu0 %v1643
      %1679 = vmatprep.subr.bf16.mxu0 0
      %1680 = vmatpush2.bf16.msra.mxu0 0
      %1681 = vmatprep.subr.bf16.mxu0 0
      %1682 = vmatpush2.bf16.msra.mxu0 0
      %1683 = vmatprep.subr.bf16.mxu0 0
      %1684 = vmatpush2.bf16.msra.mxu0 0
      %1685 = vmatprep.subr.bf16.mxu0 0
      %1686 = vmatpush2.bf16.msra.mxu0 0
      %1687 = vmatprep.subr.bf16.mxu0 0
      %1688 = vmatpush2.bf16.msra.mxu0 0
      %1689 = vmatprep.subr.bf16.mxu0 0
      %1690 = vmatpush2.bf16.msra.mxu0 0
      %1691 = vmatprep.subr.bf16.mxu0 0
      %1692 = vmatpush2.bf16.msra.mxu0 0
      %1693 = vmatprep.subr.bf16.mxu0 0
      %1694 = vmatpush2.bf16.msra.mxu0 0
      %1695 = vmatprep.mubr.bf16.mxu0 0
      %1696 = vmatmul.mubr.bf16.gmra.mxu0 %v1648
      %v1697 = vpop.f32.mrf.mxu0
      %v1698 = vadd.f32 0.0, %v1697
      %v1699 = vpop.f32.mrf.mxu0
      %v1700 = vpop.f32.mrf.mxu0
      %v1701 = vadd.f32 0.0, %v1700
      %v1702 = vpop.f32.mrf.mxu0
      %1703 = vmatprep.mubr.bf16.mxu0 0
      %1704 = vmatmul.mubr.bf16.gmra.mxu0 %v1651
      %v1705 = vpop.f32.mrf.mxu0
      %v1706 = vadd.f32 0.0, %v1705
      %v1707 = vpop.f32.mrf.mxu0
      %v1708 = vpop.f32.mrf.mxu0
      %v1709 = vadd.f32 0.0, %v1708
      %v1710 = vpop.f32.mrf.mxu0
      %1711 = vmatprep.mubr.bf16.mxu0 0
      %1712 = vmatmul.mubr.bf16.gmra.mxu0 %v1654
      %v1713 = vpop.f32.mrf.mxu0
      %v1714 = vadd.f32 0.0, %v1713
      %v1715 = vpop.f32.mrf.mxu0
      %v1716 = vpop.f32.mrf.mxu0
      %v1717 = vadd.f32 0.0, %v1716
      %v1718 = vpop.f32.mrf.mxu0
      %1719 = vmatprep.mubr.bf16.mxu0 0
      %1720 = vmatmul.mubr.bf16.gmra.mxu0 %v1657
      %v1721 = vpop.f32.mrf.mxu0
      %v1722 = vadd.f32 0.0, %v1721
      %v1723 = vpop.f32.mrf.mxu0
      %v1724 = vpop.f32.mrf.mxu0
      %v1725 = vadd.f32 0.0, %v1724
      %v1726 = vpop.f32.mrf.mxu0
      %1727 = vdwg.mxu0
      %1728 = vst.msk [vmem:[#allocation3] sm:$0xff] %vm489, %v1698
      %1729 = vst.msk [vmem:[#allocation3 + $0x8] sm:$0xff] %vm489, %v1701
      %1730 = vst.msk [vmem:[#allocation3 + $0x10] sm:$0xff] %vm489, %v1706
      %1731 = vst.msk [vmem:[#allocation3 + $0x18] sm:$0xff] %vm489, %v1709
      %1732 = vst.msk [vmem:[#allocation3 + $0x20] sm:$0xff] %vm489, %v1714
      %1733 = vst.msk [vmem:[#allocation3 + $0x28] sm:$0xff] %vm489, %v1717
      %1734 = vst.msk [vmem:[#allocation3 + $0x30] sm:$0xff] %vm489, %v1722
      %1735 = vst.msk [vmem:[#allocation3 + $0x38] sm:$0xff] %vm489, %v1725
      %v1736 = vld [vmem:[%s1404] sm:$0xf]
      %v1737 = vld [vmem:[%s1404 + $0x4] sm:$0x1]
      %v1738 = vld [vmem:[%s1404 + $0x8] sm:$0xf]
      %v1739 = vld [vmem:[%s1404 + $0xc] sm:$0x1]
      %v1740 = vld [vmem:[%s1404 + $0x10] sm:$0xf]
      %v1741 = vld [vmem:[%s1404 + $0x14] sm:$0x1]
      %v1742 = vld [vmem:[%s1404 + $0x18] sm:$0xf]
      %v1743 = vld [vmem:[%s1404 + $0x1c] sm:$0x1]
      %v1744 = vld [vmem:[%s1404 + $0x20] sm:$0xf]
      %v1745 = vld [vmem:[%s1404 + $0x24] sm:$0x1]
      %v1746 = vld [vmem:[%s1404 + $0x28] sm:$0xf]
      %v1747 = vld [vmem:[%s1404 + $0x2c] sm:$0x1]
      %v1748 = vld [vmem:[%s1404 + $0x30] sm:$0xf]
      %v1749 = vld [vmem:[%s1404 + $0x34] sm:$0x1]
      %v1750 = vld [vmem:[%s1404 + $0x38] sm:$0xf]
      %v1751 = vld [vmem:[%s1404 + $0x3c] sm:$0x1]
      %v1768 = vunpack.c.l.b16 %v1736
      %v1769 = vunpack.c.l.b16 %v1737
      %v1770 = vunpack.c.l.b16 %v1738
      %v1771 = vunpack.c.l.b16 %v1739
      %v1772 = vunpack.c.l.b16 %v1740
      %v1773 = vunpack.c.l.b16 %v1741
      %v1774 = vunpack.c.l.b16 %v1742
      %v1775 = vunpack.c.l.b16 %v1743
      %v1776 = vunpack.c.l.b16 %v1744
      %v1777 = vunpack.c.l.b16 %v1745
      %v1778 = vunpack.c.l.b16 %v1746
      %v1779 = vunpack.c.l.b16 %v1747
      %v1780 = vunpack.c.l.b16 %v1748
      %v1781 = vunpack.c.l.b16 %v1749
      %v1782 = vunpack.c.l.b16 %v1750
      %v1783 = vunpack.c.l.b16 %v1751
      %v1784 = vpack.c.b16 %v1769, %v1768
      %v1785 = vpack.c.b16 %v1771, %v1770
      %v1786 = vpack.c.b16 %v1773, %v1772
      %v1787 = vpack.c.b16 %v1775, %v1774
      %v1788 = vpack.c.b16 %v1777, %v1776
      %v1789 = vpack.c.b16 %v1779, %v1778
      %v1790 = vpack.c.b16 %v1781, %v1780
      %v1791 = vpack.c.b16 %v1783, %v1782
      %v1793 = vshrl.u32 %v1784, 16
      %v1795 = vshll.u32 %v1784, 16
      %v1797 = vrot.slane %v1795, 1
      %v1798 = vor.u32 %v1793, %v1797
      %v1800 = vshrl.u32 %v1785, 16
      %v1802 = vshll.u32 %v1785, 16
      %v1804 = vrot.slane %v1802, 1
      %v1805 = vor.u32 %v1800, %v1804
      %v1807 = vshrl.u32 %v1786, 16
      %v1809 = vshll.u32 %v1786, 16
      %v1811 = vrot.slane %v1809, 1
      %v1812 = vor.u32 %v1807, %v1811
      %v1814 = vshrl.u32 %v1787, 16
      %v1816 = vshll.u32 %v1787, 16
      %v1818 = vrot.slane %v1816, 1
      %v1819 = vor.u32 %v1814, %v1818
      %v1821 = vshrl.u32 %v1788, 16
      %v1823 = vshll.u32 %v1788, 16
      %v1825 = vrot.slane %v1823, 1
      %v1826 = vor.u32 %v1821, %v1825
      %v1828 = vshrl.u32 %v1789, 16
      %v1830 = vshll.u32 %v1789, 16
      %v1832 = vrot.slane %v1830, 1
      %v1833 = vor.u32 %v1828, %v1832
      %v1835 = vshrl.u32 %v1790, 16
      %v1837 = vshll.u32 %v1790, 16
      %v1839 = vrot.slane %v1837, 1
      %v1840 = vor.u32 %v1835, %v1839
      %v1842 = vshrl.u32 %v1791, 16
      %v1844 = vshll.u32 %v1791, 16
      %v1846 = vrot.slane %v1844, 1
      %v1847 = vor.u32 %v1842, %v1846
      %1848 = vrot.lane.b32.xlu0 %v1798, 8
      %v1849 = vpop.permute.xlu0 %1848
      %1850 = vrot.lane.b32.xlu0 %v1805, 8
      %v1851 = vpop.permute.xlu0 %1850
      %1852 = vrot.lane.b32.xlu0 %v1812, 8
      %v1853 = vpop.permute.xlu0 %1852
      %1854 = vrot.lane.b32.xlu0 %v1819, 8
      %v1855 = vpop.permute.xlu0 %1854
      %1856 = vrot.lane.b32.xlu0 %v1826, 8
      %v1857 = vpop.permute.xlu0 %1856
      %1858 = vrot.lane.b32.xlu0 %v1833, 8
      %v1859 = vpop.permute.xlu0 %1858
      %1860 = vrot.lane.b32.xlu0 %v1840, 8
      %v1861 = vpop.permute.xlu0 %1860
      %1862 = vrot.lane.b32.xlu0 %v1847, 8
      %v1863 = vpop.permute.xlu0 %1862
      %v1864 = vrot.slane %v1784, 1
      %v1865 = vrot.slane %v1785, 1
      %v1866 = vrot.slane %v1786, 1
      %v1867 = vrot.slane %v1787, 1
      %v1868 = vrot.slane %v1788, 1
      %v1869 = vrot.slane %v1789, 1
      %v1870 = vrot.slane %v1790, 1
      %v1871 = vrot.slane %v1791, 1
      %1872 = vrot.lane.b32.xlu0 %v1864, 16
      %v1873 = vpop.permute.xlu0 %1872
      %1874 = vrot.lane.b32.xlu0 %v1865, 16
      %v1875 = vpop.permute.xlu0 %1874
      %1876 = vrot.lane.b32.xlu0 %v1866, 16
      %v1877 = vpop.permute.xlu0 %1876
      %1878 = vrot.lane.b32.xlu0 %v1867, 16
      %v1879 = vpop.permute.xlu0 %1878
      %1880 = vrot.lane.b32.xlu0 %v1868, 16
      %v1881 = vpop.permute.xlu0 %1880
      %1882 = vrot.lane.b32.xlu0 %v1869, 16
      %v1883 = vpop.permute.xlu0 %1882
      %1884 = vrot.lane.b32.xlu0 %v1870, 16
      %v1885 = vpop.permute.xlu0 %1884
      %1886 = vrot.lane.b32.xlu0 %v1871, 16
      %v1887 = vpop.permute.xlu0 %1886
      %v1890 = vsel %vm489, %v1736, %v1849
      %v1893 = vsel %vm489, %v1738, %v1851
      %v1896 = vsel %vm489, %v1740, %v1853
      %v1899 = vsel %vm489, %v1742, %v1855
      %v1902 = vsel %vm489, %v1744, %v1857
      %v1905 = vsel %vm489, %v1746, %v1859
      %v1908 = vsel %vm489, %v1748, %v1861
      %v1911 = vsel %vm489, %v1750, %v1863
      %v1913 = vsel %vm1597, %v1890, %v1873
      %v1915 = vsel %vm1597, %v1893, %v1875
      %v1917 = vsel %vm1597, %v1896, %v1877
      %v1919 = vsel %vm1597, %v1899, %v1879
      %v1921 = vsel %vm1597, %v1902, %v1881
      %v1923 = vsel %vm1597, %v1905, %v1883
      %v1925 = vsel %vm1597, %v1908, %v1885
      %v1927 = vsel %vm1597, %v1911, %v1887
      %s1928 = scalar_lea.vmem %s4, 12
      %v1929 = vld [vmem:[%s1928] sm:$0xf]
      %v1930 = vld [vmem:[%s1928 + $0x4] sm:$0xf]
      %v1931 = vld [vmem:[%s1928 + $0x8] sm:$0xf]
      %v1940 = vunpack.c.l.b16 %v1913
      %v1941 = vunpack.c.l.b16 %v1915
      %v1942 = vunpack.c.l.b16 %v1917
      %v1943 = vunpack.c.l.b16 %v1919
      %v1944 = vunpack.c.l.b16 %v1921
      %v1945 = vunpack.c.l.b16 %v1923
      %v1946 = vunpack.c.l.b16 %v1925
      %v1947 = vunpack.c.l.b16 %v1927
      %v1948 = vpack.c.b16 %v1941, %v1940
      %v1949 = vpack.c.b16 %v1943, %v1942
      %v1950 = vpack.c.b16 %v1945, %v1944
      %v1951 = vpack.c.b16 %v1947, %v1946
      %v1955 = vunpack.c.l.b16 %v1929
      %v1956 = vunpack.c.l.b16 %v1930
      %v1957 = vunpack.c.l.b16 %v1931
      %v1958 = vpack.c.b16 %v1956, %v1955
      %v1959 = vpack.c.b16 %v1957, %v1957
      %v1962 = vsel %vm1646, %v1948, 0
      %v1965 = vsel %vm1646, %v1949, 0
      %v1968 = vsel %vm1646, %v1950, 0
      %v1971 = vsel %vm1646, %v1951, 0
      %v1974 = vsel %vm1659, %v1959, 0
      %1976 = vmatprep.subr.bf16.mxu0 0
      %1977 = vmatpush1.bf16.msra.mxu0 0
      %1978 = vmatprep.subr.bf16.mxu0 0
      %1979 = vmatpush1.bf16.msra.mxu0 0
      %1980 = vmatprep.subr.bf16.mxu0 0
      %1981 = vmatpush1.bf16.msra.mxu0 0
      %1982 = vmatprep.subr.bf16.mxu0 0
      %1983 = vmatpush1.bf16.msra.mxu0 0
      %1984 = vmatprep.subr.bf16.mxu0 0
      %1985 = vmatpush1.bf16.msra.mxu0 0
      %1986 = vmatprep.subr.bf16.mxu0 0
      %1987 = vmatpush1.bf16.msra.mxu0 0
      %1988 = vmatprep.subr.bf16.mxu0 0
      %1989 = vmatpush1.bf16.msra.mxu0 %v1974
      %1990 = vmatprep.subr.bf16.mxu0 0
      %1991 = vmatpush1.bf16.msra.mxu0 %v1958
      %1992 = vmatprep.subr.bf16.mxu0 0
      %1993 = vmatpush2.bf16.msra.mxu0 0
      %1994 = vmatprep.subr.bf16.mxu0 0
      %1995 = vmatpush2.bf16.msra.mxu0 0
      %1996 = vmatprep.subr.bf16.mxu0 0
      %1997 = vmatpush2.bf16.msra.mxu0 0
      %1998 = vmatprep.subr.bf16.mxu0 0
      %1999 = vmatpush2.bf16.msra.mxu0 0
      %2000 = vmatprep.subr.bf16.mxu0 0
      %2001 = vmatpush2.bf16.msra.mxu0 0
      %2002 = vmatprep.subr.bf16.mxu0 0
      %2003 = vmatpush2.bf16.msra.mxu0 0
      %2004 = vmatprep.subr.bf16.mxu0 0
      %2005 = vmatpush2.bf16.msra.mxu0 0
      %2006 = vmatprep.subr.bf16.mxu0 0
      %2007 = vmatpush2.bf16.msra.mxu0 0
      %2008 = vmatprep.mubr.bf16.mxu0 0
      %2009 = vmatmul.mubr.bf16.gmra.mxu0 %v1962
      %v2010 = vpop.f32.mrf.mxu0
      %v2011 = vadd.f32 0.0, %v2010
      %v2012 = vpop.f32.mrf.mxu0
      %v2013 = vpop.f32.mrf.mxu0
      %v2014 = vadd.f32 0.0, %v2013
      %v2015 = vpop.f32.mrf.mxu0
      %2016 = vmatprep.mubr.bf16.mxu0 0
      %2017 = vmatmul.mubr.bf16.gmra.mxu0 %v1965
      %v2018 = vpop.f32.mrf.mxu0
      %v2019 = vadd.f32 0.0, %v2018
      %v2020 = vpop.f32.mrf.mxu0
      %v2021 = vpop.f32.mrf.mxu0
      %v2022 = vadd.f32 0.0, %v2021
      %v2023 = vpop.f32.mrf.mxu0
      %2024 = vmatprep.mubr.bf16.mxu0 0
      %2025 = vmatmul.mubr.bf16.gmra.mxu0 %v1968
      %v2026 = vpop.f32.mrf.mxu0
      %v2027 = vadd.f32 0.0, %v2026
      %v2028 = vpop.f32.mrf.mxu0
      %v2029 = vpop.f32.mrf.mxu0
      %v2030 = vadd.f32 0.0, %v2029
      %v2031 = vpop.f32.mrf.mxu0
      %2032 = vmatprep.mubr.bf16.mxu0 0
      %2033 = vmatmul.mubr.bf16.gmra.mxu0 %v1971
      %v2034 = vpop.f32.mrf.mxu0
      %v2035 = vadd.f32 0.0, %v2034
      %v2036 = vpop.f32.mrf.mxu0
      %v2037 = vpop.f32.mrf.mxu0
      %v2038 = vadd.f32 0.0, %v2037
      %v2039 = vpop.f32.mrf.mxu0
      %2040 = vdwg.mxu0
      %v2041 = vld [vmem:[#allocation3] sm:$0xff]
      %v2042 = vld [vmem:[#allocation3 + $0x8] sm:$0xff]
      %v2043 = vld [vmem:[#allocation3 + $0x10] sm:$0xff]
      %v2044 = vld [vmem:[#allocation3 + $0x18] sm:$0xff]
      %v2045 = vld [vmem:[#allocation3 + $0x20] sm:$0xff]
      %v2046 = vld [vmem:[#allocation3 + $0x28] sm:$0xff]
      %v2047 = vld [vmem:[#allocation3 + $0x30] sm:$0xff]
      %v2048 = vld [vmem:[#allocation3 + $0x38] sm:$0xff]
      %v2049 = vadd.f32 %v2041, %v2011
      %v2050 = vadd.f32 %v2042, %v2014
      %v2051 = vadd.f32 %v2043, %v2019
      %v2052 = vadd.f32 %v2044, %v2022
      %v2053 = vadd.f32 %v2045, %v2027
      %v2054 = vadd.f32 %v2046, %v2030
      %v2055 = vadd.f32 %v2047, %v2035
      %v2056 = vadd.f32 %v2048, %v2038
      %2057 = vst.msk [vmem:[#allocation3] sm:$0xff] %vm489, %v2049
      %2058 = vst.msk [vmem:[#allocation3 + $0x8] sm:$0xff] %vm489, %v2050
      %2059 = vst.msk [vmem:[#allocation3 + $0x10] sm:$0xff] %vm489, %v2051
      %2060 = vst.msk [vmem:[#allocation3 + $0x18] sm:$0xff] %vm489, %v2052
      %2061 = vst.msk [vmem:[#allocation3 + $0x20] sm:$0xff] %vm489, %v2053
      %2062 = vst.msk [vmem:[#allocation3 + $0x28] sm:$0xff] %vm489, %v2054
      %2063 = vst.msk [vmem:[#allocation3 + $0x30] sm:$0xff] %vm489, %v2055
      %2064 = vst.msk [vmem:[#allocation3 + $0x38] sm:$0xff] %vm489, %v2056
      %s2065 = scalar_lea.vmem [#allocation2], 16
      %v2066 = vld [vmem:[%s2065] sm:$0xf]
      %v2067 = vld [vmem:[%s2065 + $0x4] sm:$0x1]
      %v2068 = vld [vmem:[%s2065 + $0x8] sm:$0xf]
      %v2069 = vld [vmem:[%s2065 + $0xc] sm:$0x1]
      %v2070 = vld [vmem:[%s2065 + $0x10] sm:$0xf]
      %v2071 = vld [vmem:[%s2065 + $0x14] sm:$0x1]
      %v2072 = vld [vmem:[%s2065 + $0x18] sm:$0xf]
      %v2073 = vld [vmem:[%s2065 + $0x1c] sm:$0x1]
      %v2074 = vld [vmem:[%s2065 + $0x20] sm:$0xf]
      %v2075 = vld [vmem:[%s2065 + $0x24] sm:$0x1]
      %v2076 = vld [vmem:[%s2065 + $0x28] sm:$0xf]
      %v2077 = vld [vmem:[%s2065 + $0x2c] sm:$0x1]
      %v2078 = vld [vmem:[%s2065 + $0x30] sm:$0xf]
      %v2079 = vld [vmem:[%s2065 + $0x34] sm:$0x1]
      %v2080 = vld [vmem:[%s2065 + $0x38] sm:$0xf]
      %v2081 = vld [vmem:[%s2065 + $0x3c] sm:$0x1]
      %v2098 = vunpack.c.l.b16 %v2066
      %v2099 = vunpack.c.l.b16 %v2067
      %v2100 = vunpack.c.l.b16 %v2068
      %v2101 = vunpack.c.l.b16 %v2069
      %v2102 = vunpack.c.l.b16 %v2070
      %v2103 = vunpack.c.l.b16 %v2071
      %v2104 = vunpack.c.l.b16 %v2072
      %v2105 = vunpack.c.l.b16 %v2073
      %v2106 = vunpack.c.l.b16 %v2074
      %v2107 = vunpack.c.l.b16 %v2075
      %v2108 = vunpack.c.l.b16 %v2076
      %v2109 = vunpack.c.l.b16 %v2077
      %v2110 = vunpack.c.l.b16 %v2078
      %v2111 = vunpack.c.l.b16 %v2079
      %v2112 = vunpack.c.l.b16 %v2080
      %v2113 = vunpack.c.l.b16 %v2081
      %v2114 = vpack.c.b16 %v2099, %v2098
      %v2115 = vpack.c.b16 %v2101, %v2100
      %v2116 = vpack.c.b16 %v2103, %v2102
      %v2117 = vpack.c.b16 %v2105, %v2104
      %v2118 = vpack.c.b16 %v2107, %v2106
      %v2119 = vpack.c.b16 %v2109, %v2108
      %v2120 = vpack.c.b16 %v2111, %v2110
      %v2121 = vpack.c.b16 %v2113, %v2112
      %v2123 = vshrl.u32 %v2114, 16
      %v2125 = vshll.u32 %v2114, 16
      %v2127 = vrot.slane %v2125, 1
      %v2128 = vor.u32 %v2123, %v2127
      %v2130 = vshrl.u32 %v2115, 16
      %v2132 = vshll.u32 %v2115, 16
      %v2134 = vrot.slane %v2132, 1
      %v2135 = vor.u32 %v2130, %v2134
      %v2137 = vshrl.u32 %v2116, 16
      %v2139 = vshll.u32 %v2116, 16
      %v2141 = vrot.slane %v2139, 1
      %v2142 = vor.u32 %v2137, %v2141
      %v2144 = vshrl.u32 %v2117, 16
      %v2146 = vshll.u32 %v2117, 16
      %v2148 = vrot.slane %v2146, 1
      %v2149 = vor.u32 %v2144, %v2148
      %v2151 = vshrl.u32 %v2118, 16
      %v2153 = vshll.u32 %v2118, 16
      %v2155 = vrot.slane %v2153, 1
      %v2156 = vor.u32 %v2151, %v2155
      %v2158 = vshrl.u32 %v2119, 16
      %v2160 = vshll.u32 %v2119, 16
      %v2162 = vrot.slane %v2160, 1
      %v2163 = vor.u32 %v2158, %v2162
      %v2165 = vshrl.u32 %v2120, 16
      %v2167 = vshll.u32 %v2120, 16
      %v2169 = vrot.slane %v2167, 1
      %v2170 = vor.u32 %v2165, %v2169
      %v2172 = vshrl.u32 %v2121, 16
      %v2174 = vshll.u32 %v2121, 16
      %v2176 = vrot.slane %v2174, 1
      %v2177 = vor.u32 %v2172, %v2176
      %2178 = vrot.lane.b32.xlu0 %v2128, 8
      %v2179 = vpop.permute.xlu0 %2178
      %2180 = vrot.lane.b32.xlu0 %v2135, 8
      %v2181 = vpop.permute.xlu0 %2180
      %2182 = vrot.lane.b32.xlu0 %v2142, 8
      %v2183 = vpop.permute.xlu0 %2182
      %2184 = vrot.lane.b32.xlu0 %v2149, 8
      %v2185 = vpop.permute.xlu0 %2184
      %2186 = vrot.lane.b32.xlu0 %v2156, 8
      %v2187 = vpop.permute.xlu0 %2186
      %2188 = vrot.lane.b32.xlu0 %v2163, 8
      %v2189 = vpop.permute.xlu0 %2188
      %2190 = vrot.lane.b32.xlu0 %v2170, 8
      %v2191 = vpop.permute.xlu0 %2190
      %2192 = vrot.lane.b32.xlu0 %v2177, 8
      %v2193 = vpop.permute.xlu0 %2192
      %v2194 = vrot.slane %v2114, 1
      %v2195 = vrot.slane %v2115, 1
      %v2196 = vrot.slane %v2116, 1
      %v2197 = vrot.slane %v2117, 1
      %v2198 = vrot.slane %v2118, 1
      %v2199 = vrot.slane %v2119, 1
      %v2200 = vrot.slane %v2120, 1
      %v2201 = vrot.slane %v2121, 1
      %2202 = vrot.lane.b32.xlu0 %v2194, 16
      %v2203 = vpop.permute.xlu0 %2202
      %2204 = vrot.lane.b32.xlu0 %v2195, 16
      %v2205 = vpop.permute.xlu0 %2204
      %2206 = vrot.lane.b32.xlu0 %v2196, 16
      %v2207 = vpop.permute.xlu0 %2206
      %2208 = vrot.lane.b32.xlu0 %v2197, 16
      %v2209 = vpop.permute.xlu0 %2208
      %2210 = vrot.lane.b32.xlu0 %v2198, 16
      %v2211 = vpop.permute.xlu0 %2210
      %2212 = vrot.lane.b32.xlu0 %v2199, 16
      %v2213 = vpop.permute.xlu0 %2212
      %2214 = vrot.lane.b32.xlu0 %v2200, 16
      %v2215 = vpop.permute.xlu0 %2214
      %2216 = vrot.lane.b32.xlu0 %v2201, 16
      %v2217 = vpop.permute.xlu0 %2216
      %v2220 = vsel %vm489, %v2066, %v2179
      %v2223 = vsel %vm489, %v2068, %v2181
      %v2226 = vsel %vm489, %v2070, %v2183
      %v2229 = vsel %vm489, %v2072, %v2185
      %v2232 = vsel %vm489, %v2074, %v2187
      %v2235 = vsel %vm489, %v2076, %v2189
      %v2238 = vsel %vm489, %v2078, %v2191
      %v2241 = vsel %vm489, %v2080, %v2193
      %v2243 = vsel %vm1597, %v2220, %v2203
      %v2245 = vsel %vm1597, %v2223, %v2205
      %v2247 = vsel %vm1597, %v2226, %v2207
      %v2249 = vsel %vm1597, %v2229, %v2209
      %v2251 = vsel %vm1597, %v2232, %v2211
      %v2253 = vsel %vm1597, %v2235, %v2213
      %v2255 = vsel %vm1597, %v2238, %v2215
      %v2257 = vsel %vm1597, %v2241, %v2217
      %s2258 = scalar_lea.vmem %s4, 24
      %v2259 = vld [vmem:[%s2258] sm:$0xf]
      %v2260 = vld [vmem:[%s2258 + $0x4] sm:$0xf]
      %v2261 = vld [vmem:[%s2258 + $0x8] sm:$0xf]
      %v2270 = vunpack.c.l.b16 %v2243
      %v2271 = vunpack.c.l.b16 %v2245
      %v2272 = vunpack.c.l.b16 %v2247
      %v2273 = vunpack.c.l.b16 %v2249
      %v2274 = vunpack.c.l.b16 %v2251
      %v2275 = vunpack.c.l.b16 %v2253
      %v2276 = vunpack.c.l.b16 %v2255
      %v2277 = vunpack.c.l.b16 %v2257
      %v2278 = vpack.c.b16 %v2271, %v2270
      %v2279 = vpack.c.b16 %v2273, %v2272
      %v2280 = vpack.c.b16 %v2275, %v2274
      %v2281 = vpack.c.b16 %v2277, %v2276
      %v2285 = vunpack.c.l.b16 %v2259
      %v2286 = vunpack.c.l.b16 %v2260
      %v2287 = vunpack.c.l.b16 %v2261
      %v2288 = vpack.c.b16 %v2286, %v2285
      %v2289 = vpack.c.b16 %v2287, %v2287
      %v2292 = vsel %vm1646, %v2278, 0
      %v2295 = vsel %vm1646, %v2279, 0
      %v2298 = vsel %vm1646, %v2280, 0
      %v2301 = vsel %vm1646, %v2281, 0
      %v2304 = vsel %vm1659, %v2289, 0
      %2306 = vmatprep.subr.bf16.mxu0 0
      %2307 = vmatpush1.bf16.msra.mxu0 0
      %2308 = vmatprep.subr.bf16.mxu0 0
      %2309 = vmatpush1.bf16.msra.mxu0 0
      %2310 = vmatprep.subr.bf16.mxu0 0
      %2311 = vmatpush1.bf16.msra.mxu0 0
      %2312 = vmatprep.subr.bf16.mxu0 0
      %2313 = vmatpush1.bf16.msra.mxu0 0
      %2314 = vmatprep.subr.bf16.mxu0 0
      %2315 = vmatpush1.bf16.msra.mxu0 0
      %2316 = vmatprep.subr.bf16.mxu0 0
      %2317 = vmatpush1.bf16.msra.mxu0 0
      %2318 = vmatprep.subr.bf16.mxu0 0
      %2319 = vmatpush1.bf16.msra.mxu0 %v2304
      %2320 = vmatprep.subr.bf16.mxu0 0
      %2321 = vmatpush1.bf16.msra.mxu0 %v2288
      %2322 = vmatprep.subr.bf16.mxu0 0
      %2323 = vmatpush2.bf16.msra.mxu0 0
      %2324 = vmatprep.subr.bf16.mxu0 0
      %2325 = vmatpush2.bf16.msra.mxu0 0
      %2326 = vmatprep.subr.bf16.mxu0 0
      %2327 = vmatpush2.bf16.msra.mxu0 0
      %2328 = vmatprep.subr.bf16.mxu0 0
      %2329 = vmatpush2.bf16.msra.mxu0 0
      %2330 = vmatprep.subr.bf16.mxu0 0
      %2331 = vmatpush2.bf16.msra.mxu0 0
      %2332 = vmatprep.subr.bf16.mxu0 0
      %2333 = vmatpush2.bf16.msra.mxu0 0
      %2334 = vmatprep.subr.bf16.mxu0 0
      %2335 = vmatpush2.bf16.msra.mxu0 0
      %2336 = vmatprep.subr.bf16.mxu0 0
      %2337 = vmatpush2.bf16.msra.mxu0 0
      %2338 = vmatprep.mubr.bf16.mxu0 0
      %2339 = vmatmul.mubr.bf16.gmra.mxu0 %v2292
      %v2340 = vpop.f32.mrf.mxu0
      %v2341 = vadd.f32 0.0, %v2340
      %v2342 = vpop.f32.mrf.mxu0
      %v2343 = vpop.f32.mrf.mxu0
      %v2344 = vadd.f32 0.0, %v2343
      %v2345 = vpop.f32.mrf.mxu0
      %2346 = vmatprep.mubr.bf16.mxu0 0
      %2347 = vmatmul.mubr.bf16.gmra.mxu0 %v2295
      %v2348 = vpop.f32.mrf.mxu0
      %v2349 = vadd.f32 0.0, %v2348
      %v2350 = vpop.f32.mrf.mxu0
      %v2351 = vpop.f32.mrf.mxu0
      %v2352 = vadd.f32 0.0, %v2351
      %v2353 = vpop.f32.mrf.mxu0
      %2354 = vmatprep.mubr.bf16.mxu0 0
      %2355 = vmatmul.mubr.bf16.gmra.mxu0 %v2298
      %v2356 = vpop.f32.mrf.mxu0
      %v2357 = vadd.f32 0.0, %v2356
      %v2358 = vpop.f32.mrf.mxu0
      %v2359 = vpop.f32.mrf.mxu0
      %v2360 = vadd.f32 0.0, %v2359
      %v2361 = vpop.f32.mrf.mxu0
      %2362 = vmatprep.mubr.bf16.mxu0 0
      %2363 = vmatmul.mubr.bf16.gmra.mxu0 %v2301
      %v2364 = vpop.f32.mrf.mxu0
      %v2365 = vadd.f32 0.0, %v2364
      %v2366 = vpop.f32.mrf.mxu0
      %v2367 = vpop.f32.mrf.mxu0
      %v2368 = vadd.f32 0.0, %v2367
      %v2369 = vpop.f32.mrf.mxu0
      %2370 = vdwg.mxu0
      %v2371 = vld [vmem:[#allocation3] sm:$0xff]
      %v2372 = vld [vmem:[#allocation3 + $0x8] sm:$0xff]
      %v2373 = vld [vmem:[#allocation3 + $0x10] sm:$0xff]
      %v2374 = vld [vmem:[#allocation3 + $0x18] sm:$0xff]
      %v2375 = vld [vmem:[#allocation3 + $0x20] sm:$0xff]
      %v2376 = vld [vmem:[#allocation3 + $0x28] sm:$0xff]
      %v2377 = vld [vmem:[#allocation3 + $0x30] sm:$0xff]
      %v2378 = vld [vmem:[#allocation3 + $0x38] sm:$0xff]
      %v2379 = vadd.f32 %v2371, %v2341
      %v2380 = vadd.f32 %v2372, %v2344
      %v2381 = vadd.f32 %v2373, %v2349
      %v2382 = vadd.f32 %v2374, %v2352
      %v2383 = vadd.f32 %v2375, %v2357
      %v2384 = vadd.f32 %v2376, %v2360
      %v2385 = vadd.f32 %v2377, %v2365
      %v2386 = vadd.f32 %v2378, %v2368
      %2387 = vst.msk [vmem:[#allocation3] sm:$0xff] %vm489, %v2379
      %2388 = vst.msk [vmem:[#allocation3 + $0x8] sm:$0xff] %vm489, %v2380
      %2389 = vst.msk [vmem:[#allocation3 + $0x10] sm:$0xff] %vm489, %v2381
      %2390 = vst.msk [vmem:[#allocation3 + $0x18] sm:$0xff] %vm489, %v2382
      %2391 = vst.msk [vmem:[#allocation3 + $0x20] sm:$0xff] %vm489, %v2383
      %2392 = vst.msk [vmem:[#allocation3 + $0x28] sm:$0xff] %vm489, %v2384
      %2393 = vst.msk [vmem:[#allocation3 + $0x30] sm:$0xff] %vm489, %v2385
      %2394 = vst.msk [vmem:[#allocation3 + $0x38] sm:$0xff] %vm489, %v2386
      %v2395 = vld [vmem:[#allocation3] sm:$0xff]
      %v2396 = vld [vmem:[#allocation3 + $0x8] sm:$0xff]
      %v2397 = vld [vmem:[#allocation3 + $0x10] sm:$0xff]
      %v2398 = vld [vmem:[#allocation3 + $0x18] sm:$0xff]
      %v2399 = vld [vmem:[#allocation3 + $0x20] sm:$0xff]
      %v2400 = vld [vmem:[#allocation3 + $0x28] sm:$0xff]
      %v2401 = vld [vmem:[#allocation3 + $0x30] sm:$0xff]
      %v2402 = vld [vmem:[#allocation3 + $0x38] sm:$0xff]
      %v2403 = vld [vmem:[%s5] sm:$0x1]
      %v2405 = vlaneseq
      %v2406 = vshrl.u32 %v2405, 7
      %v2407 = vsub.s32 0, %v2406
      %v2408 = vrot.slane %v2403, %v2407
      %v2410 = vmul.f32 %v2395, %v2408
      %v2411 = vmul.f32 %v2396, %v2408
      %v2412 = vmul.f32 %v2397, %v2408
      %v2413 = vmul.f32 %v2398, %v2408
      %v2414 = vmul.f32 %v2399, %v2408
      %v2415 = vmul.f32 %v2400, %v2408
      %v2416 = vmul.f32 %v2401, %v2408
      %v2417 = vmul.f32 %v2402, %v2408
      %v2418 = vld [vmem:[%s6] sm:$0x1]
      %v2420 = vlaneseq
      %v2421 = vshrl.u32 %v2420, 7
      %v2422 = vsub.s32 0, %v2421
      %v2423 = vrot.slane %v2418, %v2422
      %v2425 = vadd.f32 %v2410, %v2423
      %v2426 = vadd.f32 %v2411, %v2423
      %v2427 = vadd.f32 %v2412, %v2423
      %v2428 = vadd.f32 %v2413, %v2423
      %v2429 = vadd.f32 %v2414, %v2423
      %v2430 = vadd.f32 %v2415, %v2423
      %v2431 = vadd.f32 %v2416, %v2423
      %v2432 = vadd.f32 %v2417, %v2423
      %v2433 = vld [vmem:[%s631] sm:$0xf]
      %v2434 = vld [vmem:[%s631 + $0x10] sm:$0xf]
      %v2435 = vld [vmem:[%s631 + $0x20] sm:$0xf]
      %v2436 = vld [vmem:[%s631 + $0x30] sm:$0xf]
      %v2437 = vld [vmem:[%s631 + $0x40] sm:$0xf]
      %v2438 = vld [vmem:[%s631 + $0x50] sm:$0xf]
      %v2439 = vld [vmem:[%s631 + $0x60] sm:$0xf]
      %v2440 = vld [vmem:[%s631 + $0x70] sm:$0xf]
      %v2441 = vld [vmem:[%s7] sm:$0x3]
      %v2450 = vunpack.c.l.b16 %v2433
      %v2451 = vunpack.c.l.b16 %v2434
      %v2452 = vunpack.c.l.b16 %v2435
      %v2453 = vunpack.c.l.b16 %v2436
      %v2454 = vunpack.c.l.b16 %v2437
      %v2455 = vunpack.c.l.b16 %v2438
      %v2456 = vunpack.c.l.b16 %v2439
      %v2457 = vunpack.c.l.b16 %v2440
      %v2458 = vpack.c.b16 %v2451, %v2450
      %v2459 = vpack.c.b16 %v2453, %v2452
      %v2460 = vpack.c.b16 %v2455, %v2454
      %v2461 = vpack.c.b16 %v2457, %v2456
      %2462 = vrot.lane.b32.xlu0 %v2458, 124
      %v2463 = vpop.permute.xlu0 %2462
      %2464 = vrot.lane.b32.xlu0 %v2459, 124
      %v2465 = vpop.permute.xlu0 %2464
      %2466 = vrot.lane.b32.xlu0 %v2460, 124
      %v2467 = vpop.permute.xlu0 %2466
      %2468 = vrot.lane.b32.xlu0 %v2461, 124
      %v2469 = vpop.permute.xlu0 %2468
      %vm2470 = vcmask 31744
      %v2472 = vsel %vm2470, %v2463, 0
      %v2475 = vsel %vm2470, %v2465, 0
      %v2478 = vsel %vm2470, %v2467, 0
      %v2481 = vsel %vm2470, %v2469, 0
      %vm2483 = vcmask 1041408
      %v2485 = vsel %vm2483, %v2441, 0
      %2487 = vmatprep.subr.bf16.mxu0 0
      %2488 = vmatpush1.bf16.msra.mxu0 0
      %2489 = vmatprep.subr.bf16.mxu0 0
      %2490 = vmatpush1.bf16.msra.mxu0 0
      %2491 = vmatprep.subr.bf16.mxu0 0
      %2492 = vmatpush1.bf16.msra.mxu0 0
      %2493 = vmatprep.subr.bf16.mxu0 0
      %2494 = vmatpush1.bf16.msra.mxu0 0
      %2495 = vmatprep.subr.bf16.mxu0 0
      %2496 = vmatpush1.bf16.msra.mxu0 0
      %2497 = vmatprep.subr.bf16.mxu0 0
      %2498 = vmatpush1.bf16.msra.mxu0 0
      %2499 = vmatprep.subr.bf16.mxu0 0
      %2500 = vmatpush1.bf16.msra.mxu0 0
      %2501 = vmatprep.subr.bf16.mxu0 0
      %2502 = vmatpush1.bf16.msra.mxu0 %v2485
      %2503 = vmatprep.subr.bf16.mxu0 0
      %2504 = vmatpush2.bf16.msra.mxu0 0
      %2505 = vmatprep.subr.bf16.mxu0 0
      %2506 = vmatpush2.bf16.msra.mxu0 0
      %2507 = vmatprep.subr.bf16.mxu0 0
      %2508 = vmatpush2.bf16.msra.mxu0 0
      %2509 = vmatprep.subr.bf16.mxu0 0
      %2510 = vmatpush2.bf16.msra.mxu0 0
      %2511 = vmatprep.subr.bf16.mxu0 0
      %2512 = vmatpush2.bf16.msra.mxu0 0
      %2513 = vmatprep.subr.bf16.mxu0 0
      %2514 = vmatpush2.bf16.msra.mxu0 0
      %2515 = vmatprep.subr.bf16.mxu0 0
      %2516 = vmatpush2.bf16.msra.mxu0 0
      %2517 = vmatprep.subr.bf16.mxu0 0
      %2518 = vmatpush2.bf16.msra.mxu0 0
      %2519 = vmatprep.mubr.bf16.mxu0 0
      %2520 = vmatmul.mubr.bf16.gmra.mxu0 %v2472
      %v2521 = vpop.f32.mrf.mxu0
      %v2522 = vadd.f32 0.0, %v2521
      %v2523 = vpop.f32.mrf.mxu0
      %v2524 = vpop.f32.mrf.mxu0
      %v2525 = vadd.f32 0.0, %v2524
      %v2526 = vpop.f32.mrf.mxu0
      %2527 = vmatprep.mubr.bf16.mxu0 0
      %2528 = vmatmul.mubr.bf16.gmra.mxu0 %v2475
      %v2529 = vpop.f32.mrf.mxu0
      %v2530 = vadd.f32 0.0, %v2529
      %v2531 = vpop.f32.mrf.mxu0
      %v2532 = vpop.f32.mrf.mxu0
      %v2533 = vadd.f32 0.0, %v2532
      %v2534 = vpop.f32.mrf.mxu0
      %2535 = vmatprep.mubr.bf16.mxu0 0
      %2536 = vmatmul.mubr.bf16.gmra.mxu0 %v2478
      %v2537 = vpop.f32.mrf.mxu0
      %v2538 = vadd.f32 0.0, %v2537
      %v2539 = vpop.f32.mrf.mxu0
      %v2540 = vpop.f32.mrf.mxu0
      %v2541 = vadd.f32 0.0, %v2540
      %v2542 = vpop.f32.mrf.mxu0
      %2543 = vmatprep.mubr.bf16.mxu0 0
      %2544 = vmatmul.mubr.bf16.gmra.mxu0 %v2481
      %v2545 = vpop.f32.mrf.mxu0
      %v2546 = vadd.f32 0.0, %v2545
      %v2547 = vpop.f32.mrf.mxu0
      %v2548 = vpop.f32.mrf.mxu0
      %v2549 = vadd.f32 0.0, %v2548
      %v2550 = vpop.f32.mrf.mxu0
      %2551 = vdwg.mxu0
      %v2552 = vld [vmem:[%s8] sm:$0x1]
      %v2554 = vlaneseq
      %v2555 = vshrl.u32 %v2554, 7
      %v2556 = vsub.s32 0, %v2555
      %v2557 = vrot.slane %v2552, %v2556
      %v2559 = vmul.f32 %v2522, %v2557
      %v2560 = vmul.f32 %v2525, %v2557
      %v2561 = vmul.f32 %v2530, %v2557
      %v2562 = vmul.f32 %v2533, %v2557
      %v2563 = vmul.f32 %v2538, %v2557
      %v2564 = vmul.f32 %v2541, %v2557
      %v2565 = vmul.f32 %v2546, %v2557
      %v2566 = vmul.f32 %v2549, %v2557
      %v2567 = vld [vmem:[%s9] sm:$0x1]
      %v2569 = vlaneseq
      %v2570 = vshrl.u32 %v2569, 7
      %v2571 = vsub.s32 0, %v2570
      %v2572 = vrot.slane %v2567, %v2571
      %v2574 = vadd.f32 %v2559, %v2572
      %v2575 = vadd.f32 %v2560, %v2572
      %v2576 = vadd.f32 %v2561, %v2572
      %v2577 = vadd.f32 %v2562, %v2572
      %v2578 = vadd.f32 %v2563, %v2572
      %v2579 = vadd.f32 %v2564, %v2572
      %v2580 = vadd.f32 %v2565, %v2572
      %v2581 = vadd.f32 %v2566, %v2572
      %v2582 = vadd.f32 %v2425, %v2574
      %v2583 = vadd.f32 %v2426, %v2575
      %v2584 = vadd.f32 %v2427, %v2576
      %v2585 = vadd.f32 %v2428, %v2577
      %v2586 = vadd.f32 %v2429, %v2578
      %v2587 = vadd.f32 %v2430, %v2579
      %v2588 = vadd.f32 %v2431, %v2580
      %v2589 = vadd.f32 %v2432, %v2581
      %v2590 = vmax.f32 %v2582, 0.0
      %v2591 = vmax.f32 %v2583, 0.0
      %v2592 = vmax.f32 %v2584, 0.0
      %v2593 = vmax.f32 %v2585, 0.0
      %v2594 = vmax.f32 %v2586, 0.0
      %v2595 = vmax.f32 %v2587, 0.0
      %v2596 = vmax.f32 %v2588, 0.0
      %v2597 = vmax.f32 %v2589, 0.0
      %2598 = vst.msk [vmem:[%s359] sm:$0xff] %vm489, %v2590
      %2599 = vst.msk [vmem:[%s359 + $0x8] sm:$0xff] %vm489, %v2591
      %2600 = vst.msk [vmem:[%s359 + $0x10] sm:$0xff] %vm489, %v2592
      %2601 = vst.msk [vmem:[%s359 + $0x18] sm:$0xff] %vm489, %v2593
      %2602 = vst.msk [vmem:[%s359 + $0x20] sm:$0xff] %vm489, %v2594
      %2603 = vst.msk [vmem:[%s359 + $0x28] sm:$0xff] %vm489, %v2595
      %2604 = vst.msk [vmem:[%s359 + $0x30] sm:$0xff] %vm489, %v2596
      %2605 = vst.msk [vmem:[%s359 + $0x38] sm:$0xff] %vm489, %v2597
      %p2606 = scmp.lt.s32.totalorder %s21, 1
      %s2607 = scalar_select %p2606, %s21, 1
      %s2608 = smul.addr %s2607, 8
      %s2609 = smul.addr %s2608, 8
      %s2610 = scalar_lea.vmem %s10, %s2609
      // Predicated region
      $region61: #{tpu_custom_call.1} parent=59 // pred_check
        %p2611 = pneg %p254
      $region62: #{tpu_custom_call.1} parent=59 // pred_check_branch
        %2613 = sbr.rel (%p2611) target = $region64
      $region63: #{tpu_custom_call.1} parent=59 // pred_region
        _
      $region64: #{tpu_custom_call.1} parent=59 // pred_fallthru
        _
    $region60: #{tpu_custom_call.1} parent=5 // pred_fallthru
      _
    %p2614 = scmp.le.s32.totalorder 2, %s16
    // Predicated region
    $region65: #{tpu_custom_call.1} parent=5 // pred_check
      %p2615 = pneg %p2614
    $region66: #{tpu_custom_call.1} parent=5 // pred_check_branch
      %2617 = sbr.rel (%p2615) target = $region68
    $region67: #{tpu_custom_call.1} parent=5 // pred_region
      %s2618 = ssub.s32 %s16, 2
      // Predicated region
      $region69: #{tpu_custom_call.1} parent=67 // pred_check
        %p2619 = pneg %p260
      $region70: #{tpu_custom_call.1} parent=67 // pred_check_branch
        %2621 = sbr.rel (%p2619) target = $region72
      $region71: #{tpu_custom_call.1} parent=67 // pred_region
        %p2622 = scmp.lt.s32.totalorder %s22, 1
        %s2623 = scalar_select %p2622, %s22, 1
        %s2624 = smul.addr %s2623, 8
        %s2625 = smul.addr %s2624, 8
        %s2626 = scalar_lea.vmem %s10, %s2625
      $region72: #{tpu_custom_call.1} parent=67 // pred_fallthru
        _
    $region68: #{tpu_custom_call.1} parent=5 // pred_fallthru
      _
  $region6: #{tpu_custom_call.1} parent=0 // loop_footer
    %s20 = sadd.s32 1, %s16
  $region7: #{tpu_custom_call.1} parent=0 // loop_footer_branch
    %15 = sbr.rel target = $region3
  $region8: #{tpu_custom_call.1} parent=0 // loop_exit
    _

</llo_original>
